<compile_context>
chip_gen: v7x
topology: tpu7x:2x2x1
jax: 0.10.0
libtpu: 0.0.40
codegen_flags: <defaults>
</compile_context>

<pallas_src>
import functools
import math

import jax
import jax.numpy as jnp
from jax.experimental import pallas as pl
from jax.experimental.pallas import tpu as pltpu


# --------------------------------------------------------------------------
# helpers
# --------------------------------------------------------------------------
def _pick_tile(dim, target, unit):
    """Largest multiple of `unit` that divides `dim` and is <= target.

    Falls back to the full dim (always legal: a block equal to the full array
    dim satisfies the (8, 128) tiling constraint)."""
    if dim <= target:
        return dim
    t = (target // unit) * unit
    while t >= unit:
        if dim % t == 0:
            return t
        t -= unit
    return dim


_VMEM_LIMIT = 48 * 1024 * 1024  # > 32 MiB default (v5e/v6e), < 64 MiB physical (v7x)


# --------------------------------------------------------------------------
# tiled matmul kernel (used for c_attn and c_proj, both bias-free)
# --------------------------------------------------------------------------
def _matmul_kernel(x_ref, w_ref, o_ref, acc_ref):
    @pl.when(pl.program_id(2) == 0)
    def _init():
        acc_ref[...] = jnp.zeros_like(acc_ref)

    acc_ref[...] += jnp.dot(x_ref[...], w_ref[...],
                            preferred_element_type=jnp.float32)

    @pl.when(pl.program_id(2) == pl.num_programs(2) - 1)
    def _store():
        o_ref[...] = acc_ref[...].astype(o_ref.dtype)


def _matmul(x, w, *, tm_target=512, tn_target=512, tk_target=512):
    """x: (M, K), w: (K, N) -> (M, N)  (row-major matmul, f32 accumulation)."""
    M, K = x.shape
    K2, N = w.shape
    assert K == K2
    tm = _pick_tile(M, tm_target, 8)
    tn = _pick_tile(N, tn_target, 128)
    tk = _pick_tile(K, tk_target, 128)
    grid = (M // tm, N // tn, K // tk)

    bytes_accessed = (x.size * x.dtype.itemsize + w.size * w.dtype.itemsize
                      + M * N * x.dtype.itemsize)
    return pl.pallas_call(
        _matmul_kernel,
        out_shape=jax.ShapeDtypeStruct((M, N), x.dtype),
        grid_spec=pltpu.PrefetchScalarGridSpec(
            num_scalar_prefetch=0,
            grid=grid,
            in_specs=[
                pl.BlockSpec((tm, tk), lambda i, j, kk: (i, kk)),
                pl.BlockSpec((tk, tn), lambda i, j, kk: (kk, j)),
            ],
            out_specs=pl.BlockSpec((tm, tn), lambda i, j, kk: (i, j)),
            scratch_shapes=[pltpu.VMEM((tm, tn), jnp.float32)],
        ),
        compiler_params=pltpu.CompilerParams(
            dimension_semantics=("parallel", "parallel", "arbitrary"),
            vmem_limit_bytes=_VMEM_LIMIT,
        ),
        cost_estimate=pl.CostEstimate(
            flops=2 * M * N * K, transcendentals=0,
            bytes_accessed=bytes_accessed),
    )(x, w)


# --------------------------------------------------------------------------
# flash attention kernel with fused RoPE (online softmax)
# --------------------------------------------------------------------------
def _flash_kernel(q_ref, k_ref, v_ref, cos_q_ref, sin_q_ref, cos_k_ref,
                  sin_k_ref, o_ref, m_sc, l_sc, acc_sc, *, sm_scale, hd2):
    kv = pl.program_id(2)

    @pl.when(kv == 0)
    def _init():
        m_sc[...] = jnp.full_like(m_sc, -jnp.inf)
        l_sc[...] = jnp.zeros_like(l_sc)
        acc_sc[...] = jnp.zeros_like(acc_sc)

    q = q_ref[...].astype(jnp.float32)
    k = k_ref[...].astype(jnp.float32)
    cq, sq = cos_q_ref[...], sin_q_ref[...]
    ck, sk = cos_k_ref[...], sin_k_ref[...]

    # q / k arrive de-interleaved: first half = even pair members, second half
    # = odd pair members.  Rotate each pair (torchtune RoPE semantics).
    q1, q2 = q[:, :hd2], q[:, hd2:]
    k1, k2 = k[:, :hd2], k[:, hd2:]
    qr1 = q1 * cq - q2 * sq
    qr2 = q1 * sq + q2 * cq
    kr1 = k1 * ck - k2 * sk
    kr2 = k1 * sk + k2 * ck

    dims = (((1,), (1,)), ((), ()))   # contract head-dim halves: q @ k^T
    s = (jax.lax.dot_general(qr1, kr1, dims, preferred_element_type=jnp.float32)
         + jax.lax.dot_general(qr2, kr2, dims, preferred_element_type=jnp.float32))
    s = s * sm_scale

    m_prev = m_sc[...]
    m_new = jnp.maximum(m_prev, s.max(axis=-1, keepdims=True))
    alpha = jnp.exp(m_prev - m_new)
    p = jnp.exp(s - m_new)
    l_sc[...] = alpha * l_sc[...] + p.sum(axis=-1, keepdims=True)
    acc_sc[...] = alpha * acc_sc[...] + jnp.dot(
        p.astype(v_ref.dtype), v_ref[...], preferred_element_type=jnp.float32)
    m_sc[...] = m_new

    @pl.when(kv == pl.num_programs(2) - 1)
    def _finalize():
        o_ref[...] = (acc_sc[...] / l_sc[...]).astype(o_ref.dtype)


def _flash_attention(q, k, v, cos, sin, *, sm_scale):
    """q, k, v: (B*H, T, dh); cos, sin: (T, dh//2) -> out: (B*H, T, dh)."""
    BH, T, dh = q.shape
    hd2 = dh // 2
    tq = _pick_tile(T, 256, 8)
    tk = _pick_tile(T, 256, 8)
    grid = (BH, T // tq, T // tk)

    kernel = functools.partial(_flash_kernel, sm_scale=sm_scale, hd2=hd2)
    itemsize = q.dtype.itemsize
    return pl.pallas_call(
        kernel,
        out_shape=jax.ShapeDtypeStruct((BH, T, dh), q.dtype),
        grid_spec=pltpu.PrefetchScalarGridSpec(
            num_scalar_prefetch=0,
            grid=grid,
            in_specs=[
                pl.BlockSpec((None, tq, dh), lambda b, i, j: (b, i, 0)),  # q
                pl.BlockSpec((None, tk, dh), lambda b, i, j: (b, j, 0)),  # k
                pl.BlockSpec((None, tk, dh), lambda b, i, j: (b, j, 0)),  # v
                pl.BlockSpec((tq, hd2), lambda b, i, j: (i, 0)),          # cos(q pos)
                pl.BlockSpec((tq, hd2), lambda b, i, j: (i, 0)),          # sin(q pos)
                pl.BlockSpec((tk, hd2), lambda b, i, j: (j, 0)),          # cos(k pos)
                pl.BlockSpec((tk, hd2), lambda b, i, j: (j, 0)),          # sin(k pos)
            ],
            out_specs=pl.BlockSpec((None, tq, dh), lambda b, i, j: (b, i, 0)),
            scratch_shapes=[
                pltpu.VMEM((tq, 1), jnp.float32),    # running max
                pltpu.VMEM((tq, 1), jnp.float32),    # running denom
                pltpu.VMEM((tq, dh), jnp.float32),   # running numerator
            ],
        ),
        compiler_params=pltpu.CompilerParams(
            dimension_semantics=("parallel", "parallel", "arbitrary"),
            vmem_limit_bytes=_VMEM_LIMIT,
        ),
        cost_estimate=pl.CostEstimate(
            flops=4 * BH * T * T * dh,
            transcendentals=BH * T * T,
            bytes_accessed=(q.size + k.size + v.size + BH * T * dh) * itemsize),
    )(q, k, v, cos, sin, cos, sin)


# --------------------------------------------------------------------------
# module wrapper: Attention.forward
# --------------------------------------------------------------------------
@functools.partial(jax.jit, static_argnames=("n_heads",))
def attention_forward(x, w_attn, w_proj, *, n_heads):
    """x: (B, T, C); w_attn: (3C, C) = c_attn.weight; w_proj: (C, C) = c_proj.weight."""
    B, T, C = x.shape
    H = n_heads
    assert C % H == 0
    dh = C // H
    assert dh % 2 == 0
    hd2 = dh // 2
    rope_base = 10000.0

    # Fold the de-interleave permutation of the head dim into the q/k columns
    # of the c_attn weight (scores are invariant to a common q/k permutation).
    perm = jnp.concatenate([jnp.arange(0, dh, 2), jnp.arange(1, dh, 2)])
    col = jnp.arange(3 * C, dtype=jnp.int32).reshape(3, H, dh)
    col_qk = jnp.take(col[:2], perm, axis=-1)                 # q and k sections
    col = jnp.concatenate([col_qk, col[2:]], axis=0).reshape(-1)
    w_attn_t = jnp.take(w_attn.T, col, axis=1)                # (C, 3C), permuted cols
    w_proj_t = w_proj.T                                       # (C, C)

    # --- QKV projection (Pallas tiled matmul) ---
    x2d = x.reshape(B * T, C)
    qkv = _matmul(x2d, w_attn_t)                              # (B*T, 3C)
    qkv = qkv.reshape(B, T, 3, H, dh).transpose(2, 0, 3, 1, 4)  # (3, B, H, T, dh)
    q = qkv[0].reshape(B * H, T, dh)
    k = qkv[1].reshape(B * H, T, dh)
    v = qkv[2].reshape(B * H, T, dh)

    # RoPE tables (positions along the time axis, torchtune frequencies).
    inv_freq = rope_base ** (-jnp.arange(hd2, dtype=jnp.float32) * 2.0 / dh)
    ang = jnp.arange(T, dtype=jnp.float32)[:, None] * inv_freq[None, :]  # (T, hd2)
    cos = jnp.cos(ang)
    sin = jnp.sin(ang)

    # --- flash attention with fused RoPE (Pallas) ---
    y = _flash_attention(q, k, v, cos, sin, sm_scale=1.0 / math.sqrt(dh))
    y = y.reshape(B, H, T, dh).transpose(0, 2, 1, 3).reshape(B * T, C)

    # --- output projection (Pallas tiled matmul) ---
    out = _matmul(y, w_proj_t)
    return out.reshape(B, T, C)


# --------------------------------------------------------------------------
# pure-JAX reference (mirrors the PyTorch module semantics)
# --------------------------------------------------------------------------
def reference_attention(x, w_attn, w_proj, n_heads, base=10000.0):
    B, T, C = x.shape
    H = n_heads
    dh = C // H
    qkv = jnp.einsum("btc,nc->btn", x, w_attn)                # nn.Linear, no bias
    qkv = qkv.reshape(B, T, 3, H, dh).transpose(2, 0, 3, 1, 4)
    q, k, v = qkv[0], qkv[1], qkv[2]                          # (B, H, T, dh)

    def rope_interleaved(z):
        half = dh // 2
        theta = base ** (-jnp.arange(half, dtype=jnp.float32) * 2.0 / dh)
        ang = jnp.arange(T, dtype=jnp.float32)[:, None] * theta[None, :]
        c, s = jnp.cos(ang), jnp.sin(ang)
        zr = z.reshape(B, H, T, half, 2)
        z1, z2 = zr[..., 0], zr[..., 1]
        o1 = z1 * c - z2 * s
        o2 = z1 * s + z2 * c
        return jnp.stack([o1, o2], axis=-1).reshape(B, H, T, dh)

    q = rope_interleaved(q)
    k = rope_interleaved(k)
    scores = jnp.einsum("bhqd,bhkd->bhqk", q, k) / math.sqrt(dh)
    p = jax.nn.softmax(scores, axis=-1)
    y = jnp.einsum("bhqk,bhkd->bhqd", p, v)
    y = y.transpose(0, 2, 1, 3).reshape(B, T, C)
    return jnp.einsum("btc,nc->btn", y, w_proj)


if __name__ == "__main__":
    batch, seq, dim, heads = 2, 8, 32, 4

    key = jax.random.PRNGKey(0)
    kx, ka, kp = jax.random.split(key, 3)
    x = jax.random.normal(kx, (batch, seq, dim), dtype=jnp.float32)
    # PyTorch nn.Linear weight shapes: c_attn.weight (3*dim, dim), c_proj.weight (dim, dim)
    w_attn = jax.random.normal(ka, (3 * dim, dim), dtype=jnp.float32) * 0.05
    w_proj = jax.random.normal(kp, (dim, dim), dtype=jnp.float32) * 0.05

    out = attention_forward(x, w_attn, w_proj, n_heads=heads)
    out = jax.block_until_ready(out)

    ref = reference_attention(x, w_attn, w_proj, heads)
    assert out.shape == (batch, seq, dim)
    max_err = float(jnp.max(jnp.abs(out - ref)))
    assert jnp.allclose(out, ref, atol=1e-4, rtol=1e-4), f"mismatch vs reference: {max_err}"
    print("KERNEL_OK")
</pallas_src>

<mosaic_0001>
module attributes {stable_mosaic.version = 11 : i64} {
  func.func @_matmul_kernel(%arg0: i32, %arg1: i32, %arg2: i32, %arg3: memref<16x32xf32, #tpu.memory_space<vmem>>, %arg4: memref<32x96xf32, #tpu.memory_space<vmem>>, %arg5: memref<16x96xf32, #tpu.memory_space<vmem>>, %arg6: memref<16x96xf32, #tpu.memory_space<vmem>>) attributes {dimension_semantics = [#tpu.dimension_semantics<parallel>, #tpu.dimension_semantics<parallel>, #tpu.dimension_semantics<arbitrary>], iteration_bounds = array<i64: 1, 1, 1>, scalar_prefetch = 0 : i64, scratch_operands = 1 : i64, tpu.core_type = #tpu.core_type<tc>, window_params = [{transform_indices = @transform_0, window_bounds = array<i64: 16, 32>}, {transform_indices = @transform_1, window_bounds = array<i64: 32, 96>}, {transform_indices = @transform_2, window_bounds = array<i64: 16, 96>}]} {
    %c0_i32 = arith.constant 0 : i32
    %0 = arith.cmpi eq, %arg2, %c0_i32 : i32
    %1 = arith.extui %0 : i1 to i32
    %c0_i32_0 = arith.constant 0 : i32
    %2 = arith.cmpi ne, %1, %c0_i32_0 : i32
    scf.if %2 {
      %cst_10 = arith.constant 0.000000e+00 : f32
      %12 = vector.broadcast %cst_10 : f32 to vector<16x96xf32>
      %c0_11 = arith.constant 0 : index
      %c0_12 = arith.constant 0 : index
      %13 = vector.load %arg6[%c0_11, %c0_12] : memref<16x96xf32, #tpu.memory_space<vmem>>, vector<16x96xf32>
      tpu.vector_store %arg6[%c0_11, %c0_12], %12 {strides = array<i32>} : memref<16x96xf32, #tpu.memory_space<vmem>>, vector<16x96xf32>,
    } else {
    }
    %c0 = arith.constant 0 : index
    %c0_1 = arith.constant 0 : index
    %3 = vector.load %arg6[%c0, %c0_1] : memref<16x96xf32, #tpu.memory_space<vmem>>, vector<16x96xf32>
    %c0_2 = arith.constant 0 : index
    %c0_3 = arith.constant 0 : index
    %4 = vector.load %arg3[%c0_2, %c0_3] : memref<16x32xf32, #tpu.memory_space<vmem>>, vector<16x32xf32>
    %c0_4 = arith.constant 0 : index
    %c0_5 = arith.constant 0 : index
    %5 = vector.load %arg4[%c0_4, %c0_5] : memref<32x96xf32, #tpu.memory_space<vmem>>, vector<32x96xf32>
    %cst = arith.constant dense<0.000000e+00> : vector<16x96xf32>
    %6 = tpu.matmul %4, %5, %cst {dimension_numbers = #tpu.dot_dimension_numbers<[1], [0], [0], [1], [0, 0, 1, 1], [], []>} : vector<16x32xf32>, vector<32x96xf32>, vector<16x96xf32> -> vector<16x96xf32>
    %7 = arith.addf %3, %6 : vector<16x96xf32>
    %c0_6 = arith.constant 0 : index
    %c0_7 = arith.constant 0 : index
    %8 = vector.load %arg6[%c0_6, %c0_7] : memref<16x96xf32, #tpu.memory_space<vmem>>, vector<16x96xf32>
    tpu.vector_store %arg6[%c0_6, %c0_7], %7 {strides = array<i32>} : memref<16x96xf32, #tpu.memory_space<vmem>>, vector<16x96xf32>,
    %c0_i32_8 = arith.constant 0 : i32
    %9 = arith.cmpi eq, %arg2, %c0_i32_8 : i32
    %10 = arith.extui %9 : i1 to i32
    %c0_i32_9 = arith.constant 0 : i32
    %11 = arith.cmpi ne, %10, %c0_i32_9 : i32
    scf.if %11 {
      %c0_10 = arith.constant 0 : index
      %c0_11 = arith.constant 0 : index
      %12 = vector.load %arg6[%c0_10, %c0_11] : memref<16x96xf32, #tpu.memory_space<vmem>>, vector<16x96xf32>
      %c0_12 = arith.constant 0 : index
      %c0_13 = arith.constant 0 : index
      %13 = vector.load %arg5[%c0_12, %c0_13] : memref<16x96xf32, #tpu.memory_space<vmem>>, vector<16x96xf32>
      tpu.vector_store %arg5[%c0_12, %c0_13], %12 {strides = array<i32>} : memref<16x96xf32, #tpu.memory_space<vmem>>, vector<16x96xf32>,
    } else {
    }
    return
  }
  func.func @transform_0(%arg0: i32, %arg1: i32, %arg2: i32) -> (i32, i32) {
    %c0_i32 = arith.constant 0 : i32
    return %arg0, %arg2 : i32, i32
  }
  func.func @transform_1(%arg0: i32, %arg1: i32, %arg2: i32) -> (i32, i32) {
    %c0_i32 = arith.constant 0 : i32
    return %arg2, %arg1 : i32, i32
  }
  func.func @transform_2(%arg0: i32, %arg1: i32, %arg2: i32) -> (i32, i32) {
    %c0_i32 = arith.constant 0 : i32
    return %arg0, %arg1 : i32, i32
  }
}

module attributes {stable_mosaic.version = 11 : i64} {
  func.func @_flash_kernel(%arg0: i32, %arg1: i32, %arg2: i32, %arg3: memref<1x8x8xf32, #tpu.memory_space<vmem>>, %arg4: memref<1x8x8xf32, #tpu.memory_space<vmem>>, %arg5: memref<1x8x8xf32, #tpu.memory_space<vmem>>, %arg6: memref<8x4xf32, #tpu.memory_space<vmem>>, %arg7: memref<8x4xf32, #tpu.memory_space<vmem>>, %arg8: memref<8x4xf32, #tpu.memory_space<vmem>>, %arg9: memref<8x4xf32, #tpu.memory_space<vmem>>, %arg10: memref<1x8x8xf32, #tpu.memory_space<vmem>>, %arg11: memref<8x1xf32, #tpu.memory_space<vmem>>, %arg12: memref<8x1xf32, #tpu.memory_space<vmem>>, %arg13: memref<8x8xf32, #tpu.memory_space<vmem>>) attributes {dimension_semantics = [#tpu.dimension_semantics<parallel>, #tpu.dimension_semantics<parallel>, #tpu.dimension_semantics<arbitrary>], iteration_bounds = array<i64: 8, 1, 1>, scalar_prefetch = 0 : i64, scratch_operands = 3 : i64, tpu.core_type = #tpu.core_type<tc>, window_params = [{transform_indices = @transform_0, window_bounds = array<i64: 1, 8, 8>}, {transform_indices = @transform_1, window_bounds = array<i64: 1, 8, 8>}, {transform_indices = @transform_2, window_bounds = array<i64: 1, 8, 8>}, {transform_indices = @transform_3, window_bounds = array<i64: 8, 4>}, {transform_indices = @transform_4, window_bounds = array<i64: 8, 4>}, {transform_indices = @transform_5, window_bounds = array<i64: 8, 4>}, {transform_indices = @transform_6, window_bounds = array<i64: 8, 4>}, {transform_indices = @transform_7, window_bounds = array<i64: 1, 8, 8>}]} {
    %c0_i32 = arith.constant 0 : i32
    %0 = arith.cmpi eq, %arg2, %c0_i32 : i32
    %1 = arith.extui %0 : i1 to i32
    %c0_i32_0 = arith.constant 0 : i32
    %2 = arith.cmpi ne, %1, %c0_i32_0 : i32
    scf.if %2 {
      %cst_36 = arith.constant 0xFF800000 : f32
      %59 = vector.broadcast %cst_36 : f32 to vector<8x1xf32>
      %c0_37 = arith.constant 0 : index
      %c0_38 = arith.constant 0 : index
      %60 = vector.load %arg11[%c0_37, %c0_38] : memref<8x1xf32, #tpu.memory_space<vmem>>, vector<8x1xf32>
      tpu.vector_store %arg11[%c0_37, %c0_38], %59 {strides = array<i32>} : memref<8x1xf32, #tpu.memory_space<vmem>>, vector<8x1xf32>,
      %cst_39 = arith.constant 0.000000e+00 : f32
      %61 = vector.broadcast %cst_39 : f32 to vector<8x1xf32>
      %c0_40 = arith.constant 0 : index
      %c0_41 = arith.constant 0 : index
      %62 = vector.load %arg12[%c0_40, %c0_41] : memref<8x1xf32, #tpu.memory_space<vmem>>, vector<8x1xf32>
      tpu.vector_store %arg12[%c0_40, %c0_41], %61 {strides = array<i32>} : memref<8x1xf32, #tpu.memory_space<vmem>>, vector<8x1xf32>,
      %cst_42 = arith.constant 0.000000e+00 : f32
      %63 = vector.broadcast %cst_42 : f32 to vector<8x8xf32>
      %c0_43 = arith.constant 0 : index
      %c0_44 = arith.constant 0 : index
      %64 = vector.load %arg13[%c0_43, %c0_44] : memref<8x8xf32, #tpu.memory_space<vmem>>, vector<8x8xf32>
      tpu.vector_store %arg13[%c0_43, %c0_44], %63 {strides = array<i32>} : memref<8x8xf32, #tpu.memory_space<vmem>>, vector<8x8xf32>,
    } else {
    }
    %c0 = arith.constant 0 : index
    %c0_1 = arith.constant 0 : index
    %c0_2 = arith.constant 0 : index
    %3 = vector.load %arg3[%c0, %c0_1, %c0_2] : memref<1x8x8xf32, #tpu.memory_space<vmem>>, vector<1x8x8xf32>
    %4 = vector.shape_cast %3 : vector<1x8x8xf32> to vector<8x8xf32>
    %c0_3 = arith.constant 0 : index
    %c0_4 = arith.constant 0 : index
    %c0_5 = arith.constant 0 : index
    %5 = vector.load %arg4[%c0_3, %c0_4, %c0_5] : memref<1x8x8xf32, #tpu.memory_space<vmem>>, vector<1x8x8xf32>
    %6 = vector.shape_cast %5 : vector<1x8x8xf32> to vector<8x8xf32>
    %c0_6 = arith.constant 0 : index
    %c0_7 = arith.constant 0 : index
    %7 = vector.load %arg6[%c0_6, %c0_7] : memref<8x4xf32, #tpu.memory_space<vmem>>, vector<8x4xf32>
    %c0_8 = arith.constant 0 : index
    %c0_9 = arith.constant 0 : index
    %8 = vector.load %arg7[%c0_8, %c0_9] : memref<8x4xf32, #tpu.memory_space<vmem>>, vector<8x4xf32>
    %c0_10 = arith.constant 0 : index
    %c0_11 = arith.constant 0 : index
    %9 = vector.load %arg8[%c0_10, %c0_11] : memref<8x4xf32, #tpu.memory_space<vmem>>, vector<8x4xf32>
    %c0_12 = arith.constant 0 : index
    %c0_13 = arith.constant 0 : index
    %10 = vector.load %arg9[%c0_12, %c0_13] : memref<8x4xf32, #tpu.memory_space<vmem>>, vector<8x4xf32>
    %11 = vector.extract_strided_slice %4 {offsets = [0, 0], sizes = [8, 4], strides = [1, 1]} : vector<8x8xf32> to vector<8x4xf32>
    %12 = vector.extract_strided_slice %4 {offsets = [0, 4], sizes = [8, 4], strides = [1, 1]} : vector<8x8xf32> to vector<8x4xf32>
    %13 = vector.extract_strided_slice %6 {offsets = [0, 0], sizes = [8, 4], strides = [1, 1]} : vector<8x8xf32> to vector<8x4xf32>
    %14 = vector.extract_strided_slice %6 {offsets = [0, 4], sizes = [8, 4], strides = [1, 1]} : vector<8x8xf32> to vector<8x4xf32>
    %15 = arith.mulf %11, %7 : vector<8x4xf32>
    %16 = arith.mulf %12, %8 : vector<8x4xf32>
    %17 = arith.subf %15, %16 : vector<8x4xf32>
    %18 = arith.mulf %11, %8 : vector<8x4xf32>
    %19 = arith.mulf %12, %7 : vector<8x4xf32>
    %20 = arith.addf %18, %19 : vector<8x4xf32>
    %21 = arith.mulf %13, %9 : vector<8x4xf32>
    %22 = arith.mulf %14, %10 : vector<8x4xf32>
    %23 = arith.subf %21, %22 : vector<8x4xf32>
    %24 = arith.mulf %13, %10 : vector<8x4xf32>
    %25 = arith.mulf %14, %9 : vector<8x4xf32>
    %26 = arith.addf %24, %25 : vector<8x4xf32>
    %cst = arith.constant dense<0.000000e+00> : vector<8x8xf32>
    %27 = tpu.matmul %17, %23, %cst {dimension_numbers = #tpu.dot_dimension_numbers<[1], [1], [0], [0], [0, 0, 1, 0], [], []>} : vector<8x4xf32>, vector<8x4xf32>, vector<8x8xf32> -> vector<8x8xf32>
    %cst_14 = arith.constant dense<0.000000e+00> : vector<8x8xf32>
    %28 = tpu.matmul %20, %26, %cst_14 {dimension_numbers = #tpu.dot_dimension_numbers<[1], [1], [0], [0], [0, 0, 1, 0], [], []>} : vector<8x4xf32>, vector<8x4xf32>, vector<8x8xf32> -> vector<8x8xf32>
    %29 = arith.addf %27, %28 : vector<8x8xf32>
    %cst_15 = arith.constant 0.353553385 : f32
    %30 = vector.broadcast %cst_15 : f32 to vector<8x8xf32>
    %31 = arith.mulf %29, %30 : vector<8x8xf32>
    %c0_16 = arith.constant 0 : index
    %c0_17 = arith.constant 0 : index
    %32 = vector.load %arg11[%c0_16, %c0_17] : memref<8x1xf32, #tpu.memory_space<vmem>>, vector<8x1xf32>
    %cst_18 = arith.constant dense<0xFF800000> : vector<8xf32>
    %33 = vector.multi_reduction <maximumf>, %31, %cst_18 [1] : vector<8x8xf32> to vector<8xf32>
    %34 = vector.shape_cast %33 : vector<8xf32> to vector<8x1xf32>
    %35 = arith.maximumf %32, %34 : vector<8x1xf32>
    %36 = arith.subf %32, %35 : vector<8x1xf32>
    %37 = math.exp %36 : vector<8x1xf32>
    %38 = vector.broadcast %35 : vector<8x1xf32> to vector<8x8xf32>
    %39 = arith.subf %31, %38 : vector<8x8xf32>
    %40 = math.exp %39 : vector<8x8xf32>
    %c0_19 = arith.constant 0 : index
    %c0_20 = arith.constant 0 : index
    %41 = vector.load %arg12[%c0_19, %c0_20] : memref<8x1xf32, #tpu.memory_space<vmem>>, vector<8x1xf32>
    %42 = arith.mulf %37, %41 : vector<8x1xf32>
    %cst_21 = arith.constant dense<0.000000e+00> : vector<8xf32>
    %43 = vector.multi_reduction <add>, %40, %cst_21 [1] : vector<8x8xf32> to vector<8xf32>
    %44 = vector.shape_cast %43 : vector<8xf32> to vector<8x1xf32>
    %45 = arith.addf %42, %44 : vector<8x1xf32>
    %c0_22 = arith.constant 0 : index
    %c0_23 = arith.constant 0 : index
    %46 = vector.load %arg12[%c0_22, %c0_23] : memref<8x1xf32, #tpu.memory_space<vmem>>, vector<8x1xf32>
    tpu.vector_store %arg12[%c0_22, %c0_23], %45 {strides = array<i32>} : memref<8x1xf32, #tpu.memory_space<vmem>>, vector<8x1xf32>,
    %c0_24 = arith.constant 0 : index
    %c0_25 = arith.constant 0 : index
    %47 = vector.load %arg13[%c0_24, %c0_25] : memref<8x8xf32, #tpu.memory_space<vmem>>, vector<8x8xf32>
    %48 = vector.broadcast %37 : vector<8x1xf32> to vector<8x8xf32>
    %49 = arith.mulf %48, %47 : vector<8x8xf32>
    %c0_26 = arith.constant 0 : index
    %c0_27 = arith.constant 0 : index
    %c0_28 = arith.constant 0 : index
    %50 = vector.load %arg5[%c0_26, %c0_27, %c0_28] : memref<1x8x8xf32, #tpu.memory_space<vmem>>, vector<1x8x8xf32>
    %51 = vector.shape_cast %50 : vector<1x8x8xf32> to vector<8x8xf32>
    %cst_29 = arith.constant dense<0.000000e+00> : vector<8x8xf32>
    %52 = tpu.matmul %40, %51, %cst_29 {dimension_numbers = #tpu.dot_dimension_numbers<[1], [0], [0], [1], [0, 0, 1, 1], [], []>} : vector<8x8xf32>, vector<8x8xf32>, vector<8x8xf32> -> vector<8x8xf32>
    %53 = arith.addf %49, %52 : vector<8x8xf32>
    %c0_30 = arith.constant 0 : index
    %c0_31 = arith.constant 0 : index
    %54 = vector.load %arg13[%c0_30, %c0_31] : memref<8x8xf32, #tpu.memory_space<vmem>>, vector<8x8xf32>
    tpu.vector_store %arg13[%c0_30, %c0_31], %53 {strides = array<i32>} : memref<8x8xf32, #tpu.memory_space<vmem>>, vector<8x8xf32>,
    %c0_32 = arith.constant 0 : index
    %c0_33 = arith.constant 0 : index
    %55 = vector.load %arg11[%c0_32, %c0_33] : memref<8x1xf32, #tpu.memory_space<vmem>>, vector<8x1xf32>
    tpu.vector_store %arg11[%c0_32, %c0_33], %35 {strides = array<i32>} : memref<8x1xf32, #tpu.memory_space<vmem>>, vector<8x1xf32>,
    %c0_i32_34 = arith.constant 0 : i32
    %56 = arith.cmpi eq, %arg2, %c0_i32_34 : i32
    %57 = arith.extui %56 : i1 to i32
    %c0_i32_35 = arith.constant 0 : i32
    %58 = arith.cmpi ne, %57, %c0_i32_35 : i32
    scf.if %58 {
      %c0_36 = arith.constant 0 : index
      %c0_37 = arith.constant 0 : index
      %59 = vector.load %arg13[%c0_36, %c0_37] : memref<8x8xf32, #tpu.memory_space<vmem>>, vector<8x8xf32>
      %c0_38 = arith.constant 0 : index
      %c0_39 = arith.constant 0 : index
      %60 = vector.load %arg12[%c0_38, %c0_39] : memref<8x1xf32, #tpu.memory_space<vmem>>, vector<8x1xf32>
      %61 = vector.broadcast %60 : vector<8x1xf32> to vector<8x8xf32>
      %62 = arith.divf %59, %61 : vector<8x8xf32>
      %c0_40 = arith.constant 0 : index
      %c0_41 = arith.constant 0 : index
      %c0_42 = arith.constant 0 : index
      %63 = vector.load %arg10[%c0_40, %c0_41, %c0_42] : memref<1x8x8xf32, #tpu.memory_space<vmem>>, vector<1x8x8xf32>
      %64 = vector.shape_cast %63 : vector<1x8x8xf32> to vector<8x8xf32>
      %65 = vector.shape_cast %62 : vector<8x8xf32> to vector<1x8x8xf32>
      tpu.vector_store %arg10[%c0_40, %c0_41, %c0_42], %65 {strides = array<i32>} : memref<1x8x8xf32, #tpu.memory_space<vmem>>, vector<1x8x8xf32>,
    } else {
    }
    return
  }
  func.func @transform_0(%arg0: i32, %arg1: i32, %arg2: i32) -> (i32, i32, i32) {
    %c0_i32 = arith.constant 0 : i32
    %c0_i32_0 = arith.constant 0 : i32
    return %arg0, %arg1, %c0_i32 : i32, i32, i32
  }
  func.func @transform_1(%arg0: i32, %arg1: i32, %arg2: i32) -> (i32, i32, i32) {
    %c0_i32 = arith.constant 0 : i32
    %c0_i32_0 = arith.constant 0 : i32
    return %arg0, %arg2, %c0_i32 : i32, i32, i32
  }
  func.func @transform_2(%arg0: i32, %arg1: i32, %arg2: i32) -> (i32, i32, i32) {
    %c0_i32 = arith.constant 0 : i32
    %c0_i32_0 = arith.constant 0 : i32
    return %arg0, %arg2, %c0_i32 : i32, i32, i32
  }
  func.func @transform_3(%arg0: i32, %arg1: i32, %arg2: i32) -> (i32, i32) {
    %c0_i32 = arith.constant 0 : i32
    %c0_i32_0 = arith.constant 0 : i32
    return %arg1, %c0_i32 : i32, i32
  }
  func.func @transform_4(%arg0: i32, %arg1: i32, %arg2: i32) -> (i32, i32) {
    %c0_i32 = arith.constant 0 : i32
    %c0_i32_0 = arith.constant 0 : i32
    return %arg1, %c0_i32 : i32, i32
  }
  func.func @transform_5(%arg0: i32, %arg1: i32, %arg2: i32) -> (i32, i32) {
    %c0_i32 = arith.constant 0 : i32
    %c0_i32_0 = arith.constant 0 : i32
    return %arg2, %c0_i32 : i32, i32
  }
  func.func @transform_6(%arg0: i32, %arg1: i32, %arg2: i32) -> (i32, i32) {
    %c0_i32 = arith.constant 0 : i32
    %c0_i32_0 = arith.constant 0 : i32
    return %arg2, %c0_i32 : i32, i32
  }
  func.func @transform_7(%arg0: i32, %arg1: i32, %arg2: i32) -> (i32, i32, i32) {
    %c0_i32 = arith.constant 0 : i32
    %c0_i32_0 = arith.constant 0 : i32
    return %arg0, %arg1, %c0_i32 : i32, i32, i32
  }
}

module attributes {stable_mosaic.version = 11 : i64} {
  func.func @_matmul_kernel(%arg0: i32, %arg1: i32, %arg2: i32, %arg3: memref<16x32xf32, #tpu.memory_space<vmem>>, %arg4: memref<32x32xf32, #tpu.memory_space<vmem>>, %arg5: memref<16x32xf32, #tpu.memory_space<vmem>>, %arg6: memref<16x32xf32, #tpu.memory_space<vmem>>) attributes {dimension_semantics = [#tpu.dimension_semantics<parallel>, #tpu.dimension_semantics<parallel>, #tpu.dimension_semantics<arbitrary>], iteration_bounds = array<i64: 1, 1, 1>, scalar_prefetch = 0 : i64, scratch_operands = 1 : i64, tpu.core_type = #tpu.core_type<tc>, window_params = [{transform_indices = @transform_0, window_bounds = array<i64: 16, 32>}, {transform_indices = @transform_1, window_bounds = array<i64: 32, 32>}, {transform_indices = @transform_2, window_bounds = array<i64: 16, 32>}]} {
    %c0_i32 = arith.constant 0 : i32
    %0 = arith.cmpi eq, %arg2, %c0_i32 : i32
    %1 = arith.extui %0 : i1 to i32
    %c0_i32_0 = arith.constant 0 : i32
    %2 = arith.cmpi ne, %1, %c0_i32_0 : i32
    scf.if %2 {
      %cst_10 = arith.constant 0.000000e+00 : f32
      %12 = vector.broadcast %cst_10 : f32 to vector<16x32xf32>
      %c0_11 = arith.constant 0 : index
      %c0_12 = arith.constant 0 : index
      %13 = vector.load %arg6[%c0_11, %c0_12] : memref<16x32xf32, #tpu.memory_space<vmem>>, vector<16x32xf32>
      tpu.vector_store %arg6[%c0_11, %c0_12], %12 {strides = array<i32>} : memref<16x32xf32, #tpu.memory_space<vmem>>, vector<16x32xf32>,
    } else {
    }
    %c0 = arith.constant 0 : index
    %c0_1 = arith.constant 0 : index
    %3 = vector.load %arg6[%c0, %c0_1] : memref<16x32xf32, #tpu.memory_space<vmem>>, vector<16x32xf32>
    %c0_2 = arith.constant 0 : index
    %c0_3 = arith.constant 0 : index
    %4 = vector.load %arg3[%c0_2, %c0_3] : memref<16x32xf32, #tpu.memory_space<vmem>>, vector<16x32xf32>
    %c0_4 = arith.constant 0 : index
    %c0_5 = arith.constant 0 : index
    %5 = vector.load %arg4[%c0_4, %c0_5] : memref<32x32xf32, #tpu.memory_space<vmem>>, vector<32x32xf32>
    %cst = arith.constant dense<0.000000e+00> : vector<16x32xf32>
    %6 = tpu.matmul %4, %5, %cst {dimension_numbers = #tpu.dot_dimension_numbers<[1], [0], [0], [1], [0, 0, 1, 1], [], []>} : vector<16x32xf32>, vector<32x32xf32>, vector<16x32xf32> -> vector<16x32xf32>
    %7 = arith.addf %3, %6 : vector<16x32xf32>
    %c0_6 = arith.constant 0 : index
    %c0_7 = arith.constant 0 : index
    %8 = vector.load %arg6[%c0_6, %c0_7] : memref<16x32xf32, #tpu.memory_space<vmem>>, vector<16x32xf32>
    tpu.vector_store %arg6[%c0_6, %c0_7], %7 {strides = array<i32>} : memref<16x32xf32, #tpu.memory_space<vmem>>, vector<16x32xf32>,
    %c0_i32_8 = arith.constant 0 : i32
    %9 = arith.cmpi eq, %arg2, %c0_i32_8 : i32
    %10 = arith.extui %9 : i1 to i32
    %c0_i32_9 = arith.constant 0 : i32
    %11 = arith.cmpi ne, %10, %c0_i32_9 : i32
    scf.if %11 {
      %c0_10 = arith.constant 0 : index
      %c0_11 = arith.constant 0 : index
      %12 = vector.load %arg6[%c0_10, %c0_11] : memref<16x32xf32, #tpu.memory_space<vmem>>, vector<16x32xf32>
      %c0_12 = arith.constant 0 : index
      %c0_13 = arith.constant 0 : index
      %13 = vector.load %arg5[%c0_12, %c0_13] : memref<16x32xf32, #tpu.memory_space<vmem>>, vector<16x32xf32>
      tpu.vector_store %arg5[%c0_12, %c0_13], %12 {strides = array<i32>} : memref<16x32xf32, #tpu.memory_space<vmem>>, vector<16x32xf32>,
    } else {
    }
    return
  }
  func.func @transform_0(%arg0: i32, %arg1: i32, %arg2: i32) -> (i32, i32) {
    %c0_i32 = arith.constant 0 : i32
    return %arg0, %arg2 : i32, i32
  }
  func.func @transform_1(%arg0: i32, %arg1: i32, %arg2: i32) -> (i32, i32) {
    %c0_i32 = arith.constant 0 : i32
    return %arg2, %arg1 : i32, i32
  }
  func.func @transform_2(%arg0: i32, %arg1: i32, %arg2: i32) -> (i32, i32) {
    %c0_i32 = arith.constant 0 : i32
    return %arg0, %arg1 : i32, i32
  }
}

</mosaic_0001>

<llo_original>
// kernel: attention_forward.5
$region0: #{attention_forward.5}
  #allocation0 [shape = 'u32[]', space=smem, size = 0x4, offset = 0x4, fixed_abs, tag = 'smem constant byte address 0x4 - core index']
  #allocation1 [shape = 'u32[144,128]{1,0:T(1,128)}', space=vmem, size = 0x12000, scoped, tag = 'internal scratch']
  #allocation2 [shape = 'f32[16,32]{1,0:T(8,128)}', space=vmem, size = 0x2000, scoped, tag = 'scratch operand']
  %s0 = inlined_call_operand.vmem [shape: f32[16,32], index: 0, kind: input, shape index: {}]
  %s1 = inlined_call_operand.vmem [shape: f32[32,32], index: 1, kind: input, shape index: {}]
  %s2 = inlined_call_operand.hbm [shape: f32[16,32], index: 2, kind: output, shape index: {}]
  %s3 = sld [smem:[#allocation0]]
  $region26: #{attention_forward.5} parent=0
    _
  %s5 = ssub.s32 1, %s3
  %s6 = scalar_select 0, %s5, %s3
  $region1: #{attention_forward.5} parent=0
    #allocation3 [shape = 'u8[8192]{0}', space=vmem, size = 0x2000, scoped, tag = 'output window, operand 0, single buffered']
    #allocation4 [shape = 's32[1]{0}', space=sflag, size = 0x4, scoped, tag = 'scoped memory for attention_forward.5']
    %7 = vsyncpa [#allocation4], 0
    // Predicated region
    $region2: #{attention_forward.5} parent=1 // pred_check
      _
    $region3: #{attention_forward.5} parent=1 // pred_check_branch
      %9 = sbr.rel (0) target = $region5
    $region4: #{attention_forward.5} parent=1 // pred_region
      _
    $region5: #{attention_forward.5} parent=1 // pred_fallthru
      _
    // Predicated region
    $region6: #{attention_forward.5} parent=1 // pred_check
      _
    $region7: #{attention_forward.5} parent=1 // pred_check_branch
      %11 = sbr.rel (0) target = $region9
    $region8: #{attention_forward.5} parent=1 // pred_region
      _
    $region9: #{attention_forward.5} parent=1 // pred_fallthru
      _
    %p12 = scmp.eq.s32.totalorder 0, 0
    // Predicated region
    $region10: #{attention_forward.5} parent=1 // pred_check
      %p13 = pneg %p12
    $region11: #{attention_forward.5} parent=1 // pred_check_branch
      %15 = sbr.rel (%p13) target = $region13
    $region12: #{attention_forward.5} parent=1 // pred_region
      %vm16 = vcmask 261120
      %17 = vst.msk [vmem:[#allocation2] sm:$0xff] %vm16, 0.0
      %18 = vst.msk [vmem:[#allocation2 + $0x8] sm:$0xff] %vm16, 0.0
    $region13: #{attention_forward.5} parent=1 // pred_fallthru
      _
    %v19 = vld [vmem:[#allocation2] sm:$0xff]
    %v20 = vld [vmem:[#allocation2 + $0x8] sm:$0xff]
    %v21 = vld [vmem:[%s0] sm:$0xff]
    %v22 = vld [vmem:[%s0 + $0x8] sm:$0xff]
    %v23 = vld [vmem:[%s1] sm:$0xff]
    %v24 = vld [vmem:[%s1 + $0x8] sm:$0xff]
    %v25 = vld [vmem:[%s1 + $0x10] sm:$0xff]
    %v26 = vld [vmem:[%s1 + $0x18] sm:$0xff]
    %vm27 = vcmask 261120
    %v29 = vsel %vm27, %v21, 0
    %v32 = vsel %vm27, %v22, 0
    %34 = vmatprep.subr.mxu0 0.0
    %35 = vmatpush1.msra.mxu0 %v23
    %36 = vmatprep.subr.mxu0 0.0
    %37 = vmatpush1.msra.mxu0 %v24
    %38 = vmatprep.subr.mxu0 0.0
    %39 = vmatpush1.msra.mxu0 %v25
    %40 = vmatprep.subr.mxu0 0.0
    %41 = vmatpush1.msra.mxu0 %v26
    %42 = vmatprep.subr.mxu0 0.0
    %43 = vmatpush1.msra.mxu0 0.0
    %44 = vmatprep.subr.mxu0 0.0
    %45 = vmatpush1.msra.mxu0 0.0
    %46 = vmatprep.subr.mxu0 0.0
    %47 = vmatpush1.msra.mxu0 0.0
    %48 = vmatprep.subr.mxu0 0.0
    %49 = vmatpush1.msra.mxu0 0.0
    %50 = vmatprep.subr.mxu0 0.0
    %51 = vmatpush1.msra.mxu0 0.0
    %52 = vmatprep.subr.mxu0 0.0
    %53 = vmatpush1.msra.mxu0 0.0
    %54 = vmatprep.subr.mxu0 0.0
    %55 = vmatpush1.msra.mxu0 0.0
    %56 = vmatprep.subr.mxu0 0.0
    %57 = vmatpush1.msra.mxu0 0.0
    %58 = vmatprep.subr.mxu0 0.0
    %59 = vmatpush1.msra.mxu0 0.0
    %60 = vmatprep.subr.mxu0 0.0
    %61 = vmatpush1.msra.mxu0 0.0
    %62 = vmatprep.subr.mxu0 0.0
    %63 = vmatpush1.msra.mxu0 0.0
    %64 = vmatprep.subr.mxu0 0.0
    %65 = vmatpush1.msra.mxu0 0.0
    %66 = vmatprep.subr.mxu0 0.0
    %67 = vmatpush1.msra.mxu0 0.0
    %68 = vmatprep.subr.mxu0 0.0
    %69 = vmatpush1.msra.mxu0 0.0
    %70 = vmatprep.subr.mxu0 0.0
    %71 = vmatpush1.msra.mxu0 0.0
    %72 = vmatprep.subr.mxu0 0.0
    %73 = vmatpush1.msra.mxu0 0.0
    %74 = vmatprep.subr.mxu0 0.0
    %75 = vmatpush1.msra.mxu0 0.0
    %76 = vmatprep.subr.mxu0 0.0
    %77 = vmatpush1.msra.mxu0 0.0
    %78 = vmatprep.subr.mxu0 0.0
    %79 = vmatpush1.msra.mxu0 0.0
    %80 = vmatprep.subr.mxu0 0.0
    %81 = vmatpush1.msra.mxu0 0.0
    %82 = vmatprep.subr.mxu0 0.0
    %83 = vmatpush1.msra.mxu0 0.0
    %84 = vmatprep.subr.mxu0 0.0
    %85 = vmatpush1.msra.mxu0 0.0
    %86 = vmatprep.subr.mxu0 0.0
    %87 = vmatpush1.msra.mxu0 0.0
    %88 = vmatprep.subr.mxu0 0.0
    %89 = vmatpush1.msra.mxu0 0.0
    %90 = vmatprep.subr.mxu0 0.0
    %91 = vmatpush1.msra.mxu0 0.0
    %92 = vmatprep.subr.mxu0 0.0
    %93 = vmatpush1.msra.mxu0 0.0
    %94 = vmatprep.subr.mxu0 0.0
    %95 = vmatpush1.msra.mxu0 0.0
    %96 = vmatprep.subr.mxu0 0.0
    %97 = vmatpush1.msra.mxu0 0.0
    %98 = vmatprep.mubr.f32.mxu0 0.0
    %99 = vmatmul.mubr.f32.gmra.mrb[0].mxu0 %v29
    %v100 = vpop.f32.mrb[0].mxu0
    %v101 = vadd.f32 0.0, %v100
    %v102 = vpop.f32.mrb[0].mxu0
    %103 = vmatprep.mubr.f32.mxu0 0.0
    %104 = vmatmul.mubr.f32.gmra.mrb[0].mxu0 %v32
    %v105 = vpop.f32.mrb[0].mxu0
    %v106 = vadd.f32 0.0, %v105
    %v107 = vpop.f32.mrb[0].mxu0
    %108 = vdwg.mxu0
    %v109 = vadd.f32 %v19, %v101
    %v110 = vadd.f32 %v20, %v106
    %111 = vst.msk [vmem:[#allocation2] sm:$0xff] %vm27, %v109
    %112 = vst.msk [vmem:[#allocation2 + $0x8] sm:$0xff] %vm27, %v110
    // Predicated region
    $region14: #{attention_forward.5} parent=1 // pred_check
      %p113 = pneg %p12
    $region15: #{attention_forward.5} parent=1 // pred_check_branch
      %115 = sbr.rel (%p113) target = $region17
    $region16: #{attention_forward.5} parent=1 // pred_region
      %v116 = vld [vmem:[#allocation2] sm:$0xff]
      %v117 = vld [vmem:[#allocation2 + $0x8] sm:$0xff]
      %118 = vst.msk [vmem:[#allocation3] sm:$0xff] %vm27, %v116
      %119 = vst.msk [vmem:[#allocation3 + $0x8] sm:$0xff] %vm27, %v117
    $region17: #{attention_forward.5} parent=1 // pred_fallthru
      _
    // Predicated region
    $region18: #{attention_forward.5} parent=1 // pred_check
      _
    $region19: #{attention_forward.5} parent=1 // pred_check_branch
      %121 = sbr.rel (0) target = $region21
    $region20: #{attention_forward.5} parent=1 // pred_region
      %s123 = ssub.s32 256, 256
      %124 = vsyncadd [#allocation4], %s123
      %s125 = sshll.u32 [#allocation3], 4
      %s126 = int_to_ptr.vmem [resolvable:$true] %s125
      %131 = dma.vmem_to_hbm [thread:$0]  %s126, 256, %s2, [#allocation4], 128, 128, 8
    $region21: #{attention_forward.5} parent=1 // pred_fallthru
      _
    // Predicated region
    $region22: #{attention_forward.5} parent=1 // pred_check
      _
    $region23: #{attention_forward.5} parent=1 // pred_check_branch
      %133 = sbr.rel (0) target = $region25
    $region24: #{attention_forward.5} parent=1 // pred_region
      %134 = dma.done [#allocation4], 256
    $region25: #{attention_forward.5} parent=1 // pred_fallthru
      _
    %135 = vsyncpa [#allocation4], 1

// kernel: attention_forward.3
$region0: #{attention_forward.3}
  #allocation0 [shape = 'u32[]', space=smem, size = 0x4, offset = 0x4, fixed_abs, tag = 'smem constant byte address 0x4 - core index']
  #allocation1 [shape = 'u32[144,128]{1,0:T(1,128)}', space=vmem, size = 0x12000, scoped, tag = 'internal scratch']
  #allocation2 [shape = 'f32[16,96]{1,0:T(8,128)}', space=vmem, size = 0x2000, scoped, tag = 'scratch operand']
  %s0 = inlined_call_operand.vmem [shape: f32[16,32], index: 0, kind: input, shape index: {}]
  %s1 = inlined_call_operand.vmem [shape: f32[32,96], index: 1, kind: input, shape index: {}]
  %s2 = inlined_call_operand.vmem [shape: f32[16,96], index: 2, kind: output, shape index: {}]
  %s3 = sld [smem:[#allocation0]]
  $region26: #{attention_forward.3} parent=0
    _
  %s5 = ssub.s32 1, %s3
  %s6 = scalar_select 0, %s5, %s3
  // Predicated region
  $region2: #{attention_forward.3} parent=0 // pred_check
    _
  $region3: #{attention_forward.3} parent=0 // pred_check_branch
    %8 = sbr.rel (0) target = $region5
  $region4: #{attention_forward.3} parent=0 // pred_region
    _
  $region5: #{attention_forward.3} parent=0 // pred_fallthru
    _
  // Predicated region
  $region6: #{attention_forward.3} parent=0 // pred_check
    _
  $region7: #{attention_forward.3} parent=0 // pred_check_branch
    %10 = sbr.rel (0) target = $region9
  $region8: #{attention_forward.3} parent=0 // pred_region
    _
  $region9: #{attention_forward.3} parent=0 // pred_fallthru
    _
  %p11 = scmp.eq.s32.totalorder 0, 0
  // Predicated region
  $region10: #{attention_forward.3} parent=0 // pred_check
    %p12 = pneg %p11
  $region11: #{attention_forward.3} parent=0 // pred_check_branch
    %14 = sbr.rel (%p12) target = $region13
  $region12: #{attention_forward.3} parent=0 // pred_region
    %vm15 = vcmask 785408
    %16 = vst.msk [vmem:[#allocation2] sm:$0xff] %vm15, 0.0
    %17 = vst.msk [vmem:[#allocation2 + $0x8] sm:$0xff] %vm15, 0.0
  $region13: #{attention_forward.3} parent=0 // pred_fallthru
    _
  %v18 = vld [vmem:[#allocation2] sm:$0xff]
  %v19 = vld [vmem:[#allocation2 + $0x8] sm:$0xff]
  %v20 = vld [vmem:[%s0] sm:$0xff]
  %v21 = vld [vmem:[%s0 + $0x8] sm:$0xff]
  %v22 = vld [vmem:[%s1] sm:$0xff]
  %v23 = vld [vmem:[%s1 + $0x8] sm:$0xff]
  %v24 = vld [vmem:[%s1 + $0x10] sm:$0xff]
  %v25 = vld [vmem:[%s1 + $0x18] sm:$0xff]
  %vm26 = vcmask 261120
  %v28 = vsel %vm26, %v20, 0
  %v31 = vsel %vm26, %v21, 0
  %33 = vmatprep.subr.mxu0 0.0
  %34 = vmatpush1.msra.mxu0 %v22
  %35 = vmatprep.subr.mxu0 0.0
  %36 = vmatpush1.msra.mxu0 %v23
  %37 = vmatprep.subr.mxu0 0.0
  %38 = vmatpush1.msra.mxu0 %v24
  %39 = vmatprep.subr.mxu0 0.0
  %40 = vmatpush1.msra.mxu0 %v25
  %41 = vmatprep.subr.mxu0 0.0
  %42 = vmatpush1.msra.mxu0 0.0
  %43 = vmatprep.subr.mxu0 0.0
  %44 = vmatpush1.msra.mxu0 0.0
  %45 = vmatprep.subr.mxu0 0.0
  %46 = vmatpush1.msra.mxu0 0.0
  %47 = vmatprep.subr.mxu0 0.0
  %48 = vmatpush1.msra.mxu0 0.0
  %49 = vmatprep.subr.mxu0 0.0
  %50 = vmatpush1.msra.mxu0 0.0
  %51 = vmatprep.subr.mxu0 0.0
  %52 = vmatpush1.msra.mxu0 0.0
  %53 = vmatprep.subr.mxu0 0.0
  %54 = vmatpush1.msra.mxu0 0.0
  %55 = vmatprep.subr.mxu0 0.0
  %56 = vmatpush1.msra.mxu0 0.0
  %57 = vmatprep.subr.mxu0 0.0
  %58 = vmatpush1.msra.mxu0 0.0
  %59 = vmatprep.subr.mxu0 0.0
  %60 = vmatpush1.msra.mxu0 0.0
  %61 = vmatprep.subr.mxu0 0.0
  %62 = vmatpush1.msra.mxu0 0.0
  %63 = vmatprep.subr.mxu0 0.0
  %64 = vmatpush1.msra.mxu0 0.0
  %65 = vmatprep.subr.mxu0 0.0
  %66 = vmatpush1.msra.mxu0 0.0
  %67 = vmatprep.subr.mxu0 0.0
  %68 = vmatpush1.msra.mxu0 0.0
  %69 = vmatprep.subr.mxu0 0.0
  %70 = vmatpush1.msra.mxu0 0.0
  %71 = vmatprep.subr.mxu0 0.0
  %72 = vmatpush1.msra.mxu0 0.0
  %73 = vmatprep.subr.mxu0 0.0
  %74 = vmatpush1.msra.mxu0 0.0
  %75 = vmatprep.subr.mxu0 0.0
  %76 = vmatpush1.msra.mxu0 0.0
  %77 = vmatprep.subr.mxu0 0.0
  %78 = vmatpush1.msra.mxu0 0.0
  %79 = vmatprep.subr.mxu0 0.0
  %80 = vmatpush1.msra.mxu0 0.0
  %81 = vmatprep.subr.mxu0 0.0
  %82 = vmatpush1.msra.mxu0 0.0
  %83 = vmatprep.subr.mxu0 0.0
  %84 = vmatpush1.msra.mxu0 0.0
  %85 = vmatprep.subr.mxu0 0.0
  %86 = vmatpush1.msra.mxu0 0.0
  %87 = vmatprep.subr.mxu0 0.0
  %88 = vmatpush1.msra.mxu0 0.0
  %89 = vmatprep.subr.mxu0 0.0
  %90 = vmatpush1.msra.mxu0 0.0
  %91 = vmatprep.subr.mxu0 0.0
  %92 = vmatpush1.msra.mxu0 0.0
  %93 = vmatprep.subr.mxu0 0.0
  %94 = vmatpush1.msra.mxu0 0.0
  %95 = vmatprep.subr.mxu0 0.0
  %96 = vmatpush1.msra.mxu0 0.0
  %97 = vmatprep.mubr.f32.mxu0 0.0
  %98 = vmatmul.mubr.f32.gmra.mrb[0].mxu0 %v28
  %v99 = vpop.f32.mrb[0].mxu0
  %v100 = vadd.f32 0.0, %v99
  %v101 = vpop.f32.mrb[0].mxu0
  %102 = vmatprep.mubr.f32.mxu0 0.0
  %103 = vmatmul.mubr.f32.gmra.mrb[0].mxu0 %v31
  %v104 = vpop.f32.mrb[0].mxu0
  %v105 = vadd.f32 0.0, %v104
  %v106 = vpop.f32.mrb[0].mxu0
  %107 = vdwg.mxu0
  %v108 = vadd.f32 %v18, %v100
  %v109 = vadd.f32 %v19, %v105
  %vm110 = vcmask 785408
  %111 = vst.msk [vmem:[#allocation2] sm:$0xff] %vm110, %v108
  %112 = vst.msk [vmem:[#allocation2 + $0x8] sm:$0xff] %vm110, %v109
  // Predicated region
  $region14: #{attention_forward.3} parent=0 // pred_check
    %p113 = pneg %p11
  $region15: #{attention_forward.3} parent=0 // pred_check_branch
    %115 = sbr.rel (%p113) target = $region17
  $region16: #{attention_forward.3} parent=0 // pred_region
    %v116 = vld [vmem:[#allocation2] sm:$0xff]
    %v117 = vld [vmem:[#allocation2 + $0x8] sm:$0xff]
    %118 = vst.msk [vmem:[%s2] sm:$0xff] %vm110, %v116
    %119 = vst.msk [vmem:[%s2 + $0x8] sm:$0xff] %vm110, %v117
  $region17: #{attention_forward.3} parent=0 // pred_fallthru
    _
  // Predicated region
  $region18: #{attention_forward.3} parent=0 // pred_check
    _
  $region19: #{attention_forward.3} parent=0 // pred_check_branch
    %121 = sbr.rel (0) target = $region21
  $region20: #{attention_forward.3} parent=0 // pred_region
    _
  $region21: #{attention_forward.3} parent=0 // pred_fallthru
    _
  // Predicated region
  $region22: #{attention_forward.3} parent=0 // pred_check
    _
  $region23: #{attention_forward.3} parent=0 // pred_check_branch
    %123 = sbr.rel (0) target = $region25
  $region24: #{attention_forward.3} parent=0 // pred_region
    _
  $region25: #{attention_forward.3} parent=0 // pred_fallthru
    _

// kernel: attention_forward.4
$region0: #{attention_forward.4}
  #allocation0 [shape = 'u32[]', space=smem, size = 0x4, offset = 0x4, fixed_abs, tag = 'smem constant byte address 0x4 - core index']
  #allocation1 [shape = 'u32[144,128]{1,0:T(1,128)}', space=vmem, size = 0x12000, scoped, tag = 'internal scratch']
  #allocation2 [shape = 'f32[8,1]{1,0:T(8,128)}', space=vmem, size = 0x1000, scoped, tag = 'scratch operand']
  #allocation3 [shape = 'f32[8,1]{1,0:T(8,128)}', space=vmem, size = 0x1000, scoped, tag = 'scratch operand']
  #allocation4 [shape = 'f32[8,8]{1,0:T(8,128)}', space=vmem, size = 0x1000, scoped, tag = 'scratch operand']
  %s0 = inlined_call_operand.vmem [shape: f32[8,8,8], index: 0, kind: input, shape index: {}]
  %s1 = inlined_call_operand.vmem [shape: f32[8,8,8], index: 1, kind: input, shape index: {}]
  %s2 = inlined_call_operand.vmem [shape: f32[8,8,8], index: 2, kind: input, shape index: {}]
  %s3 = inlined_call_operand.vmem [shape: f32[8,4], index: 3, kind: input, shape index: {}, may-alias: {3,5}]
  %s4 = inlined_call_operand.vmem [shape: f32[8,4], index: 4, kind: input, shape index: {}, may-alias: {4,6}]
  %s5 = inlined_call_operand.vmem [shape: f32[8,4], index: 5, kind: input, shape index: {}, may-alias: {3,5}]
  %s6 = inlined_call_operand.vmem [shape: f32[8,4], index: 6, kind: input, shape index: {}, may-alias: {4,6}]
  %s7 = inlined_call_operand.vmem [shape: f32[8,8,8], index: 7, kind: output, shape index: {}]
  %s8 = sld [smem:[#allocation0]]
  $region69: #{attention_forward.4} parent=0
    _
  %s10 = ssub.s32 1, %s8
  %s11 = scalar_select 0, %s10, %s8
  loop: start=0, step=1, limit=10
  $region2: #{attention_forward.4} parent=0 // loop_pre_header
    _
  $region3: #{attention_forward.4} parent=0 // loop_header
    %s13 = sphi 0, %s17
    %p14 = scmp.ge.s32.totalorder %s13, 10
    %s20 = sphi 0, %s39
    %s21 = sphi 0, %s35
    %s22 = sphi 0, %s31
    %s23 = sphi 0, %s20
    %s24 = sphi 0, %s21
    %s25 = sphi 0, %s22
    %s26 = sphi 0, %s23
    %s27 = sphi 0, %s24
    %s28 = sphi 0, %s25
    %s44 = sphi 0, %s46
    %s47 = sphi 0, %s44
    %s48 = sphi 0, %s47
    %s64 = sphi 0, %s48
    %s72 = sphi 0, %s74
    %s75 = sphi 0, %s72
    %s76 = sphi 0, %s75
    %s92 = sphi 0, %s76
    %s100 = sphi 0, %s102
    %s103 = sphi 0, %s100
    %s104 = sphi 0, %s103
    %s120 = sphi 0, %s104
    %s126 = sphi 0, %s128
    %s129 = sphi 0, %s126
    %s130 = sphi 0, %s129
    %s146 = sphi 0, %s130
    %s152 = sphi 0, %s154
    %s155 = sphi 0, %s152
    %s156 = sphi 0, %s155
    %s172 = sphi 0, %s156
    %s178 = sphi 0, %s180
    %s181 = sphi 0, %s178
    %s182 = sphi 0, %s181
    %s198 = sphi 0, %s182
    %s204 = sphi 0, %s206
    %s207 = sphi 0, %s204
    %s208 = sphi 0, %s207
    %s224 = sphi 0, %s208
    %s232 = sphi 0, %s234
    %s235 = sphi 0, %s232
    %s236 = sphi 0, %s235
    %s252 = sphi 0, %s236
  $region4: #{attention_forward.4} parent=0 // loop_header_branch
    %16 = sbr.rel (%p14) target = $region8
  $region5: #{attention_forward.4} parent=0 // loop_body
    %s18 = ssub.s32 %s13, 1
    %s19 = ssub.s32 %s13, 2
    %s29 = sadd.s32 1, %s22
    %p30 = scmp.ge.s32.totalorder %s29, 1
    %s31 = scalar_select %p30, 0, %s29
    %s32 = sadd.s32 1, %s21
    %s33 = scalar_select %p30, %s32, %s21
    %p34 = scmp.ge.s32.totalorder %s33, 1
    %s35 = scalar_select %p34, 0, %s33
    %s36 = sadd.s32 1, %s20
    %s37 = scalar_select %p34, %s36, %s20
    %p38 = scmp.ge.s32.totalorder %s37, 8
    %s39 = scalar_select %p38, 0, %s37
    %s40 = ssub.s32 %s20, %s39
    %s41 = ssub.s32 %s21, %s35
    %s42 = sor.u32 %s40, %s41
    %p43 = scmp.eq.s32.totalorder %s42, 0
    %s45 = sadd.s32 %s44, 1
    %s46 = scalar_select %p43, %s44, %s45
    %p49 = pneg %p43
    %p50 = scmp.eq.s32.totalorder %s13, 7
    %p51 = por %p49, %p50
    %p52 = scmp.ne.s32.totalorder %s44, %s47
    %p53 = scmp.eq.s32.totalorder %s13, 0
    %p54 = por %p52, %p53
    %p55 = scmp.ne.s32.totalorder %s44, %s47
    %p56 = scmp.eq.s32.totalorder %s18, 7
    %p57 = por %p55, %p56
    %p58 = scmp.ne.s32.totalorder %s47, %s48
    %p59 = scmp.eq.s32.totalorder %s18, 0
    %p60 = por %p58, %p59
    %p61 = scmp.ne.s32.totalorder %s47, %s48
    %p62 = scmp.eq.s32.totalorder %s19, 7
    %p63 = por %p61, %p62
    %p65 = scmp.ne.s32.totalorder %s48, %s64
    %p66 = scmp.eq.s32.totalorder %s19, 0
    %p67 = por %p65, %p66
    %s68 = ssub.s32 %s20, %s39
    %s69 = ssub.s32 %s22, %s31
    %s70 = sor.u32 %s68, %s69
    %p71 = scmp.eq.s32.totalorder %s70, 0
    %s73 = sadd.s32 %s72, 1
    %s74 = scalar_select %p71, %s72, %s73
    %p77 = pneg %p71
    %p78 = scmp.eq.s32.totalorder %s13, 7
    %p79 = por %p77, %p78
    %p80 = scmp.ne.s32.totalorder %s72, %s75
    %p81 = scmp.eq.s32.totalorder %s13, 0
    %p82 = por %p80, %p81
    %p83 = scmp.ne.s32.totalorder %s72, %s75
    %p84 = scmp.eq.s32.totalorder %s18, 7
    %p85 = por %p83, %p84
    %p86 = scmp.ne.s32.totalorder %s75, %s76
    %p87 = scmp.eq.s32.totalorder %s18, 0
    %p88 = por %p86, %p87
    %p89 = scmp.ne.s32.totalorder %s75, %s76
    %p90 = scmp.eq.s32.totalorder %s19, 7
    %p91 = por %p89, %p90
    %p93 = scmp.ne.s32.totalorder %s76, %s92
    %p94 = scmp.eq.s32.totalorder %s19, 0
    %p95 = por %p93, %p94
    %s96 = ssub.s32 %s20, %s39
    %s97 = ssub.s32 %s22, %s31
    %s98 = sor.u32 %s96, %s97
    %p99 = scmp.eq.s32.totalorder %s98, 0
    %s101 = sadd.s32 %s100, 1
    %s102 = scalar_select %p99, %s100, %s101
    %p105 = pneg %p99
    %p106 = scmp.eq.s32.totalorder %s13, 7
    %p107 = por %p105, %p106
    %p108 = scmp.ne.s32.totalorder %s100, %s103
    %p109 = scmp.eq.s32.totalorder %s13, 0
    %p110 = por %p108, %p109
    %p111 = scmp.ne.s32.totalorder %s100, %s103
    %p112 = scmp.eq.s32.totalorder %s18, 7
    %p113 = por %p111, %p112
    %p114 = scmp.ne.s32.totalorder %s103, %s104
    %p115 = scmp.eq.s32.totalorder %s18, 0
    %p116 = por %p114, %p115
    %p117 = scmp.ne.s32.totalorder %s103, %s104
    %p118 = scmp.eq.s32.totalorder %s19, 7
    %p119 = por %p117, %p118
    %p121 = scmp.ne.s32.totalorder %s104, %s120
    %p122 = scmp.eq.s32.totalorder %s19, 0
    %p123 = por %p121, %p122
    %s124 = ssub.s32 %s21, %s35
    %p125 = scmp.eq.s32.totalorder %s124, 0
    %s127 = sadd.s32 %s126, 1
    %s128 = scalar_select %p125, %s126, %s127
    %p131 = pneg %p125
    %p132 = scmp.eq.s32.totalorder %s13, 7
    %p133 = por %p131, %p132
    %p134 = scmp.ne.s32.totalorder %s126, %s129
    %p135 = scmp.eq.s32.totalorder %s13, 0
    %p136 = por %p134, %p135
    %p137 = scmp.ne.s32.totalorder %s126, %s129
    %p138 = scmp.eq.s32.totalorder %s18, 7
    %p139 = por %p137, %p138
    %p140 = scmp.ne.s32.totalorder %s129, %s130
    %p141 = scmp.eq.s32.totalorder %s18, 0
    %p142 = por %p140, %p141
    %p143 = scmp.ne.s32.totalorder %s129, %s130
    %p144 = scmp.eq.s32.totalorder %s19, 7
    %p145 = por %p143, %p144
    %p147 = scmp.ne.s32.totalorder %s130, %s146
    %p148 = scmp.eq.s32.totalorder %s19, 0
    %p149 = por %p147, %p148
    %s150 = ssub.s32 %s21, %s35
    %p151 = scmp.eq.s32.totalorder %s150, 0
    %s153 = sadd.s32 %s152, 1
    %s154 = scalar_select %p151, %s152, %s153
    %p157 = pneg %p151
    %p158 = scmp.eq.s32.totalorder %s13, 7
    %p159 = por %p157, %p158
    %p160 = scmp.ne.s32.totalorder %s152, %s155
    %p161 = scmp.eq.s32.totalorder %s13, 0
    %p162 = por %p160, %p161
    %p163 = scmp.ne.s32.totalorder %s152, %s155
    %p164 = scmp.eq.s32.totalorder %s18, 7
    %p165 = por %p163, %p164
    %p166 = scmp.ne.s32.totalorder %s155, %s156
    %p167 = scmp.eq.s32.totalorder %s18, 0
    %p168 = por %p166, %p167
    %p169 = scmp.ne.s32.totalorder %s155, %s156
    %p170 = scmp.eq.s32.totalorder %s19, 7
    %p171 = por %p169, %p170
    %p173 = scmp.ne.s32.totalorder %s156, %s172
    %p174 = scmp.eq.s32.totalorder %s19, 0
    %p175 = por %p173, %p174
    %s176 = ssub.s32 %s22, %s31
    %p177 = scmp.eq.s32.totalorder %s176, 0
    %s179 = sadd.s32 %s178, 1
    %s180 = scalar_select %p177, %s178, %s179
    %p183 = pneg %p177
    %p184 = scmp.eq.s32.totalorder %s13, 7
    %p185 = por %p183, %p184
    %p186 = scmp.ne.s32.totalorder %s178, %s181
    %p187 = scmp.eq.s32.totalorder %s13, 0
    %p188 = por %p186, %p187
    %p189 = scmp.ne.s32.totalorder %s178, %s181
    %p190 = scmp.eq.s32.totalorder %s18, 7
    %p191 = por %p189, %p190
    %p192 = scmp.ne.s32.totalorder %s181, %s182
    %p193 = scmp.eq.s32.totalorder %s18, 0
    %p194 = por %p192, %p193
    %p195 = scmp.ne.s32.totalorder %s181, %s182
    %p196 = scmp.eq.s32.totalorder %s19, 7
    %p197 = por %p195, %p196
    %p199 = scmp.ne.s32.totalorder %s182, %s198
    %p200 = scmp.eq.s32.totalorder %s19, 0
    %p201 = por %p199, %p200
    %s202 = ssub.s32 %s22, %s31
    %p203 = scmp.eq.s32.totalorder %s202, 0
    %s205 = sadd.s32 %s204, 1
    %s206 = scalar_select %p203, %s204, %s205
    %p209 = pneg %p203
    %p210 = scmp.eq.s32.totalorder %s13, 7
    %p211 = por %p209, %p210
    %p212 = scmp.ne.s32.totalorder %s204, %s207
    %p213 = scmp.eq.s32.totalorder %s13, 0
    %p214 = por %p212, %p213
    %p215 = scmp.ne.s32.totalorder %s204, %s207
    %p216 = scmp.eq.s32.totalorder %s18, 7
    %p217 = por %p215, %p216
    %p218 = scmp.ne.s32.totalorder %s207, %s208
    %p219 = scmp.eq.s32.totalorder %s18, 0
    %p220 = por %p218, %p219
    %p221 = scmp.ne.s32.totalorder %s207, %s208
    %p222 = scmp.eq.s32.totalorder %s19, 7
    %p223 = por %p221, %p222
    %p225 = scmp.ne.s32.totalorder %s208, %s224
    %p226 = scmp.eq.s32.totalorder %s19, 0
    %p227 = por %p225, %p226
    %s228 = ssub.s32 %s20, %s39
    %s229 = ssub.s32 %s21, %s35
    %s230 = sor.u32 %s228, %s229
    %p231 = scmp.eq.s32.totalorder %s230, 0
    %s233 = sadd.s32 %s232, 1
    %s234 = scalar_select %p231, %s232, %s233
    %p237 = pneg %p231
    %p238 = scmp.eq.s32.totalorder %s13, 7
    %p239 = por %p237, %p238
    %p240 = scmp.ne.s32.totalorder %s232, %s235
    %p241 = scmp.eq.s32.totalorder %s13, 0
    %p242 = por %p240, %p241
    %p243 = scmp.ne.s32.totalorder %s232, %s235
    %p244 = scmp.eq.s32.totalorder %s18, 7
    %p245 = por %p243, %p244
    %p246 = scmp.ne.s32.totalorder %s235, %s236
    %p247 = scmp.eq.s32.totalorder %s18, 0
    %p248 = por %p246, %p247
    %p249 = scmp.ne.s32.totalorder %s235, %s236
    %p250 = scmp.eq.s32.totalorder %s19, 7
    %p251 = por %p249, %p250
    %p253 = scmp.ne.s32.totalorder %s236, %s252
    %p254 = scmp.eq.s32.totalorder %s19, 0
    %p255 = por %p253, %p254
    %p256 = scmp.le.s32.totalorder 1, %s13
    %p257 = scmp.lt.s32.totalorder %s13, 9
    %p258 = pnand %p256, %p257
    %p259 = pneg %p258
    // Predicated region
    $region9: #{attention_forward.4} parent=5 // pred_check
      _
    $region10: #{attention_forward.4} parent=5 // pred_check_branch
      %261 = sbr.rel (%p258) target = $region12
    $region11: #{attention_forward.4} parent=5 // pred_region
      %s262 = ssub.s32 %s13, 1
      // Predicated region
      $region13: #{attention_forward.4} parent=11 // pred_check
        %p263 = pneg %p142
      $region14: #{attention_forward.4} parent=11 // pred_check_branch
        %265 = sbr.rel (%p263) target = $region16
      $region15: #{attention_forward.4} parent=11 // pred_region
        %p266 = scmp.lt.s32.totalorder %s24, 0
        %s267 = scalar_select %p266, %s24, 0
        %s268 = smul.addr %s267, 8
        %s269 = scalar_lea.vmem %s3, %s268
      $region16: #{attention_forward.4} parent=11 // pred_fallthru
        _
      // Predicated region
      $region17: #{attention_forward.4} parent=11 // pred_check
        %p270 = pneg %p168
      $region18: #{attention_forward.4} parent=11 // pred_check_branch
        %272 = sbr.rel (%p270) target = $region20
      $region19: #{attention_forward.4} parent=11 // pred_region
        %p273 = scmp.lt.s32.totalorder %s24, 0
        %s274 = scalar_select %p273, %s24, 0
        %s275 = smul.addr %s274, 8
        %s276 = scalar_lea.vmem %s4, %s275
      $region20: #{attention_forward.4} parent=11 // pred_fallthru
        _
      // Predicated region
      $region21: #{attention_forward.4} parent=11 // pred_check
        %p277 = pneg %p194
      $region22: #{attention_forward.4} parent=11 // pred_check_branch
        %279 = sbr.rel (%p277) target = $region24
      $region23: #{attention_forward.4} parent=11 // pred_region
        %p280 = scmp.lt.s32.totalorder %s25, 0
        %s281 = scalar_select %p280, %s25, 0
        %s282 = smul.addr %s281, 8
        %s283 = scalar_lea.vmem %s5, %s282
      $region24: #{attention_forward.4} parent=11 // pred_fallthru
        _
      // Predicated region
      $region25: #{attention_forward.4} parent=11 // pred_check
        %p284 = pneg %p220
      $region26: #{attention_forward.4} parent=11 // pred_check_branch
        %286 = sbr.rel (%p284) target = $region28
      $region27: #{attention_forward.4} parent=11 // pred_region
        %p287 = scmp.lt.s32.totalorder %s25, 0
        %s288 = scalar_select %p287, %s25, 0
        %s289 = smul.addr %s288, 8
        %s290 = scalar_lea.vmem %s6, %s289
      $region28: #{attention_forward.4} parent=11 // pred_fallthru
        _
    $region12: #{attention_forward.4} parent=5 // pred_fallthru
      _
    %p291 = scmp.lt.s32.totalorder %s13, 8
    // Predicated region
    $region29: #{attention_forward.4} parent=5 // pred_check
      %p292 = pneg %p291
    $region30: #{attention_forward.4} parent=5 // pred_check_branch
      %294 = sbr.rel (%p292) target = $region32
    $region31: #{attention_forward.4} parent=5 // pred_region
      // Predicated region
      $region33: #{attention_forward.4} parent=31 // pred_check
        %p295 = pneg %p54
      $region34: #{attention_forward.4} parent=31 // pred_check_branch
        %297 = sbr.rel (%p295) target = $region36
      $region35: #{attention_forward.4} parent=31 // pred_region
        %p298 = scmp.lt.s32.totalorder %s20, 7
        %s299 = scalar_select %p298, %s20, 7
        %p300 = scmp.lt.s32.totalorder %s21, 0
        %s301 = scalar_select %p300, %s21, 0
        %s302 = sadd.s32 %s301, %s299
        %s303 = smul.addr %s302, 8
        %s304 = scalar_lea.vmem %s0, %s303
      $region36: #{attention_forward.4} parent=31 // pred_fallthru
        _
      // Predicated region
      $region37: #{attention_forward.4} parent=31 // pred_check
        %p305 = pneg %p82
      $region38: #{attention_forward.4} parent=31 // pred_check_branch
        %307 = sbr.rel (%p305) target = $region40
      $region39: #{attention_forward.4} parent=31 // pred_region
        %p308 = scmp.lt.s32.totalorder %s20, 7
        %s309 = scalar_select %p308, %s20, 7
        %p310 = scmp.lt.s32.totalorder %s22, 0
        %s311 = scalar_select %p310, %s22, 0
        %s312 = sadd.s32 %s311, %s309
        %s313 = smul.addr %s312, 8
        %s314 = scalar_lea.vmem %s1, %s313
      $region40: #{attention_forward.4} parent=31 // pred_fallthru
        _
      // Predicated region
      $region41: #{attention_forward.4} parent=31 // pred_check
        %p315 = pneg %p110
      $region42: #{attention_forward.4} parent=31 // pred_check_branch
        %317 = sbr.rel (%p315) target = $region44
      $region43: #{attention_forward.4} parent=31 // pred_region
        %p318 = scmp.lt.s32.totalorder %s20, 7
        %s319 = scalar_select %p318, %s20, 7
        %p320 = scmp.lt.s32.totalorder %s22, 0
        %s321 = scalar_select %p320, %s22, 0
        %s322 = sadd.s32 %s321, %s319
        %s323 = smul.addr %s322, 8
        %s324 = scalar_lea.vmem %s2, %s323
      $region44: #{attention_forward.4} parent=31 // pred_fallthru
        _
    $region32: #{attention_forward.4} parent=5 // pred_fallthru
      _
    %p325 = scmp.le.s32.totalorder 1, %s13
    %p326 = scmp.lt.s32.totalorder %s13, 9
    %p327 = pnand %p325, %p326
    %p328 = pneg %p327
    // Predicated region
    $region45: #{attention_forward.4} parent=5 // pred_check
      _
    $region46: #{attention_forward.4} parent=5 // pred_check_branch
      %330 = sbr.rel (%p327) target = $region48
    $region47: #{attention_forward.4} parent=5 // pred_region
      %s331 = ssub.s32 %s13, 1
      %p332 = scmp.lt.s32.totalorder %s23, 7
      %s333 = scalar_select %p332, %s23, 7
      %p334 = scmp.lt.s32.totalorder %s24, 0
      %s335 = scalar_select %p334, %s24, 0
      %s336 = sadd.s32 %s335, %s333
      %s337 = smul.addr %s336, 8
      %s338 = scalar_lea.vmem %s0, %s337
      %p339 = pneg %p60
      %p340 = pneg %p57
      %p341 = scmp.lt.s32.totalorder %s23, 7
      %s342 = scalar_select %p341, %s23, 7
      %p343 = scmp.lt.s32.totalorder %s25, 0
      %s344 = scalar_select %p343, %s25, 0
      %s345 = sadd.s32 %s344, %s342
      %s346 = smul.addr %s345, 8
      %s347 = scalar_lea.vmem %s1, %s346
      %p348 = pneg %p88
      %p349 = pneg %p85
      %p350 = scmp.lt.s32.totalorder %s23, 7
      %s351 = scalar_select %p350, %s23, 7
      %p352 = scmp.lt.s32.totalorder %s25, 0
      %s353 = scalar_select %p352, %s25, 0
      %s354 = sadd.s32 %s353, %s351
      %s355 = smul.addr %s354, 8
      %s356 = scalar_lea.vmem %s2, %s355
      %p357 = pneg %p116
      %p358 = pneg %p113
      %p359 = scmp.lt.s32.totalorder %s24, 0
      %s360 = scalar_select %p359, %s24, 0
      %s361 = smul.addr %s360, 8
      %s362 = scalar_lea.vmem %s3, %s361
      %p363 = pneg %p142
      %p364 = pneg %p139
      %p365 = scmp.lt.s32.totalorder %s24, 0
      %s366 = scalar_select %p365, %s24, 0
      %s367 = smul.addr %s366, 8
      %s368 = scalar_lea.vmem %s4, %s367
      %p369 = pneg %p168
      %p370 = pneg %p165
      %p371 = scmp.lt.s32.totalorder %s25, 0
      %s372 = scalar_select %p371, %s25, 0
      %s373 = smul.addr %s372, 8
      %s374 = scalar_lea.vmem %s5, %s373
      %p375 = pneg %p194
      %p376 = pneg %p191
      %p377 = scmp.lt.s32.totalorder %s25, 0
      %s378 = scalar_select %p377, %s25, 0
      %s379 = smul.addr %s378, 8
      %s380 = scalar_lea.vmem %s6, %s379
      %p381 = pneg %p220
      %p382 = pneg %p217
      %p383 = pneg %p248
      %p384 = pneg %p245
      %p385 = scmp.lt.s32.totalorder %s23, 7
      %s386 = scalar_select %p385, %s23, 7
      %p387 = scmp.lt.s32.totalorder %s24, 0
      %s388 = scalar_select %p387, %s24, 0
      %s389 = sadd.s32 %s388, %s386
      %s390 = smul.addr %s389, 8
      %s391 = scalar_lea.vmem %s7, %s390
      %p392 = scmp.lt.s32.totalorder %s23, 7
      %s393 = scalar_select %p392, %s23, 7
      %p394 = scmp.lt.s32.totalorder %s24, 0
      %s395 = scalar_select %p394, %s24, 0
      %s396 = sadd.s32 %s395, %s393
      %s397 = smul.addr %s396, 8
      %s398 = scalar_lea.vmem %s0, %s397
      %p399 = scmp.lt.s32.totalorder %s23, 7
      %s400 = scalar_select %p399, %s23, 7
      %p401 = scmp.lt.s32.totalorder %s25, 0
      %s402 = scalar_select %p401, %s25, 0
      %s403 = sadd.s32 %s402, %s400
      %s404 = smul.addr %s403, 8
      %s405 = scalar_lea.vmem %s1, %s404
      %p406 = scmp.lt.s32.totalorder %s23, 7
      %s407 = scalar_select %p406, %s23, 7
      %p408 = scmp.lt.s32.totalorder %s25, 0
      %s409 = scalar_select %p408, %s25, 0
      %s410 = sadd.s32 %s409, %s407
      %s411 = smul.addr %s410, 8
      %s412 = scalar_lea.vmem %s2, %s411
      %p413 = scmp.lt.s32.totalorder %s24, 0
      %s414 = scalar_select %p413, %s24, 0
      %s415 = smul.addr %s414, 8
      %s416 = scalar_lea.vmem %s3, %s415
      %p417 = scmp.lt.s32.totalorder %s24, 0
      %s418 = scalar_select %p417, %s24, 0
      %s419 = smul.addr %s418, 8
      %s420 = scalar_lea.vmem %s4, %s419
      %p421 = scmp.lt.s32.totalorder %s25, 0
      %s422 = scalar_select %p421, %s25, 0
      %s423 = smul.addr %s422, 8
      %s424 = scalar_lea.vmem %s5, %s423
      %p425 = scmp.lt.s32.totalorder %s25, 0
      %s426 = scalar_select %p425, %s25, 0
      %s427 = smul.addr %s426, 8
      %s428 = scalar_lea.vmem %s6, %s427
      %p429 = scmp.lt.s32.totalorder %s23, 7
      %s430 = scalar_select %p429, %s23, 7
      %p431 = scmp.lt.s32.totalorder %s24, 0
      %s432 = scalar_select %p431, %s24, 0
      %s433 = sadd.s32 %s432, %s430
      %s434 = smul.addr %s433, 8
      %s435 = scalar_lea.vmem %s7, %s434
      %p436 = scmp.eq.s32.totalorder %s25, 0
      // Predicated region
      $region49: #{attention_forward.4} parent=47 // pred_check
        %p437 = pneg %p436
      $region50: #{attention_forward.4} parent=47 // pred_check_branch
        %439 = sbr.rel (%p437) target = $region52
      $region51: #{attention_forward.4} parent=47 // pred_region
        %vm440 = vcmask 7168
        %441 = vst.msk [vmem:[#allocation2] sm:$0xff] %vm440, -inf
        %442 = vst.msk [vmem:[#allocation3] sm:$0xff] %vm440, 0.0
        %vm443 = vcmask 64512
        %444 = vst.msk [vmem:[#allocation4] sm:$0xff] %vm443, 0.0
      $region52: #{attention_forward.4} parent=47 // pred_fallthru
        _
      %v445 = vld [vmem:[%s398] sm:$0xff]
      %v446 = vld [vmem:[%s405] sm:$0xff]
      %v447 = vld [vmem:[%s416] sm:$0xff]
      %v448 = vld [vmem:[%s420] sm:$0xff]
      %v449 = vld [vmem:[%s424] sm:$0xff]
      %v450 = vld [vmem:[%s428] sm:$0xff]
      %v451 = vmul.f32 %v445, %v447
      %453 = vrot.lane.b32.xlu0 %v448, 4
      %v454 = vpop.permute.xlu0 %453
      %v456 = vmul.f32 %v445, %v454
      %458 = vrot.lane.b32.xlu0 %v456, 124
      %v459 = vpop.permute.xlu0 %458
      %v461 = vsub.f32 %v451, %v459
      %v462 = vmul.f32 %v445, %v448
      %464 = vrot.lane.b32.xlu0 %v447, 4
      %v465 = vpop.permute.xlu0 %464
      %v467 = vmul.f32 %v445, %v465
      %469 = vrot.lane.b32.xlu0 %v467, 124
      %v470 = vpop.permute.xlu0 %469
      %v472 = vadd.f32 %v462, %v470
      %v473 = vmul.f32 %v446, %v449
      %475 = vrot.lane.b32.xlu0 %v450, 4
      %v476 = vpop.permute.xlu0 %475
      %v478 = vmul.f32 %v446, %v476
      %480 = vrot.lane.b32.xlu0 %v478, 124
      %v481 = vpop.permute.xlu0 %480
      %v483 = vsub.f32 %v473, %v481
      %v484 = vmul.f32 %v446, %v450
      %486 = vrot.lane.b32.xlu0 %v449, 4
      %v487 = vpop.permute.xlu0 %486
      %v489 = vmul.f32 %v446, %v487
      %491 = vrot.lane.b32.xlu0 %v489, 124
      %v492 = vpop.permute.xlu0 %491
      %v494 = vadd.f32 %v484, %v492
      %vm495 = vcmask 31744
      %v497 = vsel %vm495, %v472, 0
      %v500 = vsel %vm495, %v494, 0
      %502 = vmatprep.subr.mxu0 0.0
      %503 = vmatpush1.xpose.msra.mxu0 %v500
      %504 = vmatprep.subr.mxu0 0.0
      %505 = vmatpush1.xpose.msra.mxu0 0.0
      %506 = vmatprep.subr.mxu0 0.0
      %507 = vmatpush1.xpose.msra.mxu0 0.0
      %508 = vmatprep.subr.mxu0 0.0
      %509 = vmatpush1.xpose.msra.mxu0 0.0
      %510 = vmatprep.subr.mxu0 0.0
      %511 = vmatpush1.xpose.msra.mxu0 0.0
      %512 = vmatprep.subr.mxu0 0.0
      %513 = vmatpush1.xpose.msra.mxu0 0.0
      %514 = vmatprep.subr.mxu0 0.0
      %515 = vmatpush1.xpose.msra.mxu0 0.0
      %516 = vmatprep.subr.mxu0 0.0
      %517 = vmatpush1.xpose.msra.mxu0 0.0
      %518 = vmatprep.subr.mxu0 0.0
      %519 = vmatpush1.xpose.msra.mxu0 0.0
      %520 = vmatprep.subr.mxu0 0.0
      %521 = vmatpush1.xpose.msra.mxu0 0.0
      %522 = vmatprep.subr.mxu0 0.0
      %523 = vmatpush1.xpose.msra.mxu0 0.0
      %524 = vmatprep.subr.mxu0 0.0
      %525 = vmatpush1.xpose.msra.mxu0 0.0
      %526 = vmatprep.subr.mxu0 0.0
      %527 = vmatpush1.xpose.msra.mxu0 0.0
      %528 = vmatprep.subr.mxu0 0.0
      %529 = vmatpush1.xpose.msra.mxu0 0.0
      %530 = vmatprep.subr.mxu0 0.0
      %531 = vmatpush1.xpose.msra.mxu0 0.0
      %532 = vmatprep.subr.mxu0 0.0
      %533 = vmatpush1.xpose.msra.mxu0 0.0
      %534 = vmatprep.subr.mxu0 0.0
      %535 = vmatpush1.xpose.msra.mxu0 0.0
      %536 = vmatprep.subr.mxu0 0.0
      %537 = vmatpush1.xpose.msra.mxu0 0.0
      %538 = vmatprep.subr.mxu0 0.0
      %539 = vmatpush1.xpose.msra.mxu0 0.0
      %540 = vmatprep.subr.mxu0 0.0
      %541 = vmatpush1.xpose.msra.mxu0 0.0
      %542 = vmatprep.subr.mxu0 0.0
      %543 = vmatpush1.xpose.msra.mxu0 0.0
      %544 = vmatprep.subr.mxu0 0.0
      %545 = vmatpush1.xpose.msra.mxu0 0.0
      %546 = vmatprep.subr.mxu0 0.0
      %547 = vmatpush1.xpose.msra.mxu0 0.0
      %548 = vmatprep.subr.mxu0 0.0
      %549 = vmatpush1.xpose.msra.mxu0 0.0
      %550 = vmatprep.subr.mxu0 0.0
      %551 = vmatpush1.xpose.msra.mxu0 0.0
      %552 = vmatprep.subr.mxu0 0.0
      %553 = vmatpush1.xpose.msra.mxu0 0.0
      %554 = vmatprep.subr.mxu0 0.0
      %555 = vmatpush1.xpose.msra.mxu0 0.0
      %556 = vmatprep.subr.mxu0 0.0
      %557 = vmatpush1.xpose.msra.mxu0 0.0
      %558 = vmatprep.subr.mxu0 0.0
      %559 = vmatpush1.xpose.msra.mxu0 0.0
      %560 = vmatprep.subr.mxu0 0.0
      %561 = vmatpush1.xpose.msra.mxu0 0.0
      %562 = vmatprep.subr.mxu0 0.0
      %563 = vmatpush1.xpose.msra.mxu0 0.0
      %564 = vmatprep.subr.mxu0 0.0
      %565 = vmatpush1.xpose.msra.mxu0 0.0
      %566 = vmatprep.mubr.f32.mxu0 0.0
      %567 = vmatmul.mubr.f32.gmra.mrb[0].mxu0 %v497
      %v568 = vpop.f32.mrb[0].mxu0
      %v569 = vadd.f32 0.0, %v568
      %v570 = vpop.f32.mrb[0].mxu0
      %571 = vdwg.mxu0
      %v573 = vsel %vm495, %v461, 0
      %v576 = vsel %vm495, %v483, 0
      %578 = vmatprep.subr.mxu0 0.0
      %579 = vmatpush1.xpose.msra.mxu0 %v576
      %580 = vmatprep.subr.mxu0 0.0
      %581 = vmatpush1.xpose.msra.mxu0 0.0
      %582 = vmatprep.subr.mxu0 0.0
      %583 = vmatpush1.xpose.msra.mxu0 0.0
      %584 = vmatprep.subr.mxu0 0.0
      %585 = vmatpush1.xpose.msra.mxu0 0.0
      %586 = vmatprep.subr.mxu0 0.0
      %587 = vmatpush1.xpose.msra.mxu0 0.0
      %588 = vmatprep.subr.mxu0 0.0
      %589 = vmatpush1.xpose.msra.mxu0 0.0
      %590 = vmatprep.subr.mxu0 0.0
      %591 = vmatpush1.xpose.msra.mxu0 0.0
      %592 = vmatprep.subr.mxu0 0.0
      %593 = vmatpush1.xpose.msra.mxu0 0.0
      %594 = vmatprep.subr.mxu0 0.0
      %595 = vmatpush1.xpose.msra.mxu0 0.0
      %596 = vmatprep.subr.mxu0 0.0
      %597 = vmatpush1.xpose.msra.mxu0 0.0
      %598 = vmatprep.subr.mxu0 0.0
      %599 = vmatpush1.xpose.msra.mxu0 0.0
      %600 = vmatprep.subr.mxu0 0.0
      %601 = vmatpush1.xpose.msra.mxu0 0.0
      %602 = vmatprep.subr.mxu0 0.0
      %603 = vmatpush1.xpose.msra.mxu0 0.0
      %604 = vmatprep.subr.mxu0 0.0
      %605 = vmatpush1.xpose.msra.mxu0 0.0
      %606 = vmatprep.subr.mxu0 0.0
      %607 = vmatpush1.xpose.msra.mxu0 0.0
      %608 = vmatprep.subr.mxu0 0.0
      %609 = vmatpush1.xpose.msra.mxu0 0.0
      %610 = vmatprep.subr.mxu0 0.0
      %611 = vmatpush1.xpose.msra.mxu0 0.0
      %612 = vmatprep.subr.mxu0 0.0
      %613 = vmatpush1.xpose.msra.mxu0 0.0
      %614 = vmatprep.subr.mxu0 0.0
      %615 = vmatpush1.xpose.msra.mxu0 0.0
      %616 = vmatprep.subr.mxu0 0.0
      %617 = vmatpush1.xpose.msra.mxu0 0.0
      %618 = vmatprep.subr.mxu0 0.0
      %619 = vmatpush1.xpose.msra.mxu0 0.0
      %620 = vmatprep.subr.mxu0 0.0
      %621 = vmatpush1.xpose.msra.mxu0 0.0
      %622 = vmatprep.subr.mxu0 0.0
      %623 = vmatpush1.xpose.msra.mxu0 0.0
      %624 = vmatprep.subr.mxu0 0.0
      %625 = vmatpush1.xpose.msra.mxu0 0.0
      %626 = vmatprep.subr.mxu0 0.0
      %627 = vmatpush1.xpose.msra.mxu0 0.0
      %628 = vmatprep.subr.mxu0 0.0
      %629 = vmatpush1.xpose.msra.mxu0 0.0
      %630 = vmatprep.subr.mxu0 0.0
      %631 = vmatpush1.xpose.msra.mxu0 0.0
      %632 = vmatprep.subr.mxu0 0.0
      %633 = vmatpush1.xpose.msra.mxu0 0.0
      %634 = vmatprep.subr.mxu0 0.0
      %635 = vmatpush1.xpose.msra.mxu0 0.0
      %636 = vmatprep.subr.mxu0 0.0
      %637 = vmatpush1.xpose.msra.mxu0 0.0
      %638 = vmatprep.subr.mxu0 0.0
      %639 = vmatpush1.xpose.msra.mxu0 0.0
      %640 = vmatprep.subr.mxu0 0.0
      %641 = vmatpush1.xpose.msra.mxu0 0.0
      %642 = vmatprep.mubr.f32.mxu0 0.0
      %643 = vmatmul.mubr.f32.gmra.mrb[0].mxu0 %v573
      %v644 = vpop.f32.mrb[0].mxu0
      %v645 = vadd.f32 %v569, %v644
      %v646 = vpop.f32.mrb[0].mxu0
      %647 = vdwg.mxu0
      %v648 = vmul.f32 %v645, 0.35355338
      %v649 = vld [vmem:[#allocation2] sm:$0xff]
      %vm650 = vcmask 64512
      %v651 = vsel %vm650, %v648, -inf
      %652 = vmax.xlane.f32.xlu0 %v651
      %v653 = vpop.xlane.xlu0 %652
      %v654 = vmax.f32 %v649, %v653
      %v655 = vsub.f32 %v649, %v654
      %v656 = vmul.f32 %v655, 1.442695
      %v657 = vpow.pop %v656
      %659 = vset.pattern.permute.xlu0 0
      %660 = vperm.xlu0 %659, %v654
      %v661 = vpop.permute.xlu0 %660
      %v663 = vsub.f32 %v648, %v661
      %v664 = vmul.f32 %v663, 1.442695
      %v665 = vpow.pop %v664
      %v666 = vld [vmem:[#allocation3] sm:$0xff]
      %v667 = vmul.f32 %v657, %v666
      %v668 = vsel %vm650, %v665, 0.0
      %669 = vadd.xlane.f32.xlu0 %v668
      %v670 = vpop.xlane.xlu0 %669
      %v671 = vadd.f32 %v667, %v670
      %vm672 = vcmask 7168
      %673 = vst.msk [vmem:[#allocation3] sm:$0xff] %vm672, %v671
      %v674 = vld [vmem:[#allocation4] sm:$0xff]
      %676 = vset.pattern.permute.xlu0 0
      %677 = vperm.xlu0 %676, %v657
      %v678 = vpop.permute.xlu0 %677
      %v680 = vmul.f32 %v678, %v674
      %v681 = vld [vmem:[%s412] sm:$0xff]
      %v683 = vsel %vm650, %v665, 0
      %685 = vmatprep.subr.mxu0 0.0
      %686 = vmatpush1.msra.mxu0 %v681
      %687 = vmatprep.subr.mxu0 0.0
      %688 = vmatpush1.msra.mxu0 0.0
      %689 = vmatprep.subr.mxu0 0.0
      %690 = vmatpush1.msra.mxu0 0.0
      %691 = vmatprep.subr.mxu0 0.0
      %692 = vmatpush1.msra.mxu0 0.0
      %693 = vmatprep.subr.mxu0 0.0
      %694 = vmatpush1.msra.mxu0 0.0
      %695 = vmatprep.subr.mxu0 0.0
      %696 = vmatpush1.msra.mxu0 0.0
      %697 = vmatprep.subr.mxu0 0.0
      %698 = vmatpush1.msra.mxu0 0.0
      %699 = vmatprep.subr.mxu0 0.0
      %700 = vmatpush1.msra.mxu0 0.0
      %701 = vmatprep.subr.mxu0 0.0
      %702 = vmatpush1.msra.mxu0 0.0
      %703 = vmatprep.subr.mxu0 0.0
      %704 = vmatpush1.msra.mxu0 0.0
      %705 = vmatprep.subr.mxu0 0.0
      %706 = vmatpush1.msra.mxu0 0.0
      %707 = vmatprep.subr.mxu0 0.0
      %708 = vmatpush1.msra.mxu0 0.0
      %709 = vmatprep.subr.mxu0 0.0
      %710 = vmatpush1.msra.mxu0 0.0
      %711 = vmatprep.subr.mxu0 0.0
      %712 = vmatpush1.msra.mxu0 0.0
      %713 = vmatprep.subr.mxu0 0.0
      %714 = vmatpush1.msra.mxu0 0.0
      %715 = vmatprep.subr.mxu0 0.0
      %716 = vmatpush1.msra.mxu0 0.0
      %717 = vmatprep.subr.mxu0 0.0
      %718 = vmatpush1.msra.mxu0 0.0
      %719 = vmatprep.subr.mxu0 0.0
      %720 = vmatpush1.msra.mxu0 0.0
      %721 = vmatprep.subr.mxu0 0.0
      %722 = vmatpush1.msra.mxu0 0.0
      %723 = vmatprep.subr.mxu0 0.0
      %724 = vmatpush1.msra.mxu0 0.0
      %725 = vmatprep.subr.mxu0 0.0
      %726 = vmatpush1.msra.mxu0 0.0
      %727 = vmatprep.subr.mxu0 0.0
      %728 = vmatpush1.msra.mxu0 0.0
      %729 = vmatprep.subr.mxu0 0.0
      %730 = vmatpush1.msra.mxu0 0.0
      %731 = vmatprep.subr.mxu0 0.0
      %732 = vmatpush1.msra.mxu0 0.0
      %733 = vmatprep.subr.mxu0 0.0
      %734 = vmatpush1.msra.mxu0 0.0
      %735 = vmatprep.subr.mxu0 0.0
      %736 = vmatpush1.msra.mxu0 0.0
      %737 = vmatprep.subr.mxu0 0.0
      %738 = vmatpush1.msra.mxu0 0.0
      %739 = vmatprep.subr.mxu0 0.0
      %740 = vmatpush1.msra.mxu0 0.0
      %741 = vmatprep.subr.mxu0 0.0
      %742 = vmatpush1.msra.mxu0 0.0
      %743 = vmatprep.subr.mxu0 0.0
      %744 = vmatpush1.msra.mxu0 0.0
      %745 = vmatprep.subr.mxu0 0.0
      %746 = vmatpush1.msra.mxu0 0.0
      %747 = vmatprep.subr.mxu0 0.0
      %748 = vmatpush1.msra.mxu0 0.0
      %749 = vmatprep.mubr.f32.mxu0 0.0
      %750 = vmatmul.mubr.f32.gmra.mrb[0].mxu0 %v683
      %v751 = vpop.f32.mrb[0].mxu0
      %v752 = vadd.f32 0.0, %v751
      %v753 = vpop.f32.mrb[0].mxu0
      %754 = vdwg.mxu0
      %v755 = vadd.f32 %v680, %v752
      %756 = vst.msk [vmem:[#allocation4] sm:$0xff] %vm650, %v755
      %757 = vst.msk [vmem:[#allocation2] sm:$0xff] %vm672, %v654
      // Predicated region
      $region53: #{attention_forward.4} parent=47 // pred_check
        %p758 = pneg %p436
      $region54: #{attention_forward.4} parent=47 // pred_check_branch
        %760 = sbr.rel (%p758) target = $region56
      $region55: #{attention_forward.4} parent=47 // pred_region
        %v761 = vld [vmem:[#allocation4] sm:$0xff]
        %v762 = vld [vmem:[#allocation3] sm:$0xff]
        %764 = vset.pattern.permute.xlu0 0
        %765 = vperm.xlu0 %764, %v762
        %v766 = vpop.permute.xlu0 %765
        %v768 = vrcp.pop %v766
        %v769 = vmul.f32 %v761, %v768
        %770 = vst.msk [vmem:[%s435] sm:$0xff] %vm650, %v769
      $region56: #{attention_forward.4} parent=47 // pred_fallthru
        _
      %p771 = scmp.lt.s32.totalorder %s23, 7
      %s772 = scalar_select %p771, %s23, 7
      %p773 = scmp.lt.s32.totalorder %s24, 0
      %s774 = scalar_select %p773, %s24, 0
      %s775 = sadd.s32 %s774, %s772
      %s776 = smul.addr %s775, 8
      %s777 = scalar_lea.vmem %s7, %s776
      // Predicated region
      $region57: #{attention_forward.4} parent=47 // pred_check
        %p778 = pneg %p245
      $region58: #{attention_forward.4} parent=47 // pred_check_branch
        %780 = sbr.rel (%p778) target = $region60
      $region59: #{attention_forward.4} parent=47 // pred_region
        _
      $region60: #{attention_forward.4} parent=47 // pred_fallthru
        _
    $region48: #{attention_forward.4} parent=5 // pred_fallthru
      _
    %p781 = scmp.le.s32.totalorder 2, %s13
    // Predicated region
    $region61: #{attention_forward.4} parent=5 // pred_check
      %p782 = pneg %p781
    $region62: #{attention_forward.4} parent=5 // pred_check_branch
      %784 = sbr.rel (%p782) target = $region64
    $region63: #{attention_forward.4} parent=5 // pred_region
      %s785 = ssub.s32 %s13, 2
      // Predicated region
      $region65: #{attention_forward.4} parent=63 // pred_check
        %p786 = pneg %p251
      $region66: #{attention_forward.4} parent=63 // pred_check_branch
        %788 = sbr.rel (%p786) target = $region68
      $region67: #{attention_forward.4} parent=63 // pred_region
        %p789 = scmp.lt.s32.totalorder %s26, 7
        %s790 = scalar_select %p789, %s26, 7
        %p791 = scmp.lt.s32.totalorder %s27, 0
        %s792 = scalar_select %p791, %s27, 0
        %s793 = sadd.s32 %s792, %s790
        %s794 = smul.addr %s793, 8
        %s795 = scalar_lea.vmem %s7, %s794
      $region68: #{attention_forward.4} parent=63 // pred_fallthru
        _
    $region64: #{attention_forward.4} parent=5 // pred_fallthru
      _
  $region6: #{attention_forward.4} parent=0 // loop_footer
    %s17 = sadd.s32 1, %s13
  $region7: #{attention_forward.4} parent=0 // loop_footer_branch
    %12 = sbr.rel target = $region3
  $region8: #{attention_forward.4} parent=0 // loop_exit
    _

</llo_original>
